<compile_context>
chip_gen: v7x
topology: tpu7x:2x2x1
jax: 0.10.0
libtpu: 0.0.40
codegen_flags: <defaults>
</compile_context>

<pallas_src>
import math
import jax
import jax.numpy as jnp
from jax.experimental import pallas as pl
from jax.experimental.pallas import tpu as pltpu


def _round_up(a, b):
    return (a + b - 1) // b * b


def prompt_encoder_kernel(x_ref, w1_ref, b1_ref, w2_ref, b2_ref, o_ref, h_ref):
    # h = SiLU(x @ W1 + b1): computed once per row tile (first N tile) and
    # reused across all N tiles via the persistent VMEM scratch h_ref.
    @pl.when(pl.program_id(1) == 0)
    def _():
        h = jnp.dot(x_ref[...], w1_ref[...], preferred_element_type=jnp.float32)
        h = h + b1_ref[...].astype(jnp.float32)
        # Dropout1d: inference mode -> identity (no-op).
        # TODO(synk): training-mode channel dropout (needs RNG mask) not implemented.
        h_ref[...] = h * jax.nn.sigmoid(h)          # SiLU in f32

    # mean tile: h @ W2[:, j*tn : (j+1)*tn] + b2  (bf16 MXU, f32 accumulation)
    y = jnp.dot(h_ref[...].astype(w2_ref.dtype), w2_ref[...],
                preferred_element_type=jnp.float32)
    o_ref[...] = (y + b2_ref[...].astype(jnp.float32)).astype(o_ref.dtype)


def _pick_col_tile(n, candidates=(1024, 512, 256, 128)):
    """Largest lane-aligned tile that divides n; else full width (always legal)."""
    for t in candidates:
        if n >= t and n % t == 0:
            return t
    return n


def prompt_encoder_forward(x, w1, b1, w2, b2):
    """x: [M, in]; w1: [in, bottle]; b1: [1, bottle]; w2: [bottle, out]; b2: [1, out].

    Returns (mean, logvar) with logvar = None, matching the PyTorch forward.
    """
    M, K = x.shape
    B = w1.shape[1]
    N = w2.shape[1]

    # Row tiling: feed the MXU with big tiles; pad M so the grid divides evenly.
    row_align = 16 if x.dtype == jnp.bfloat16 else 8
    tm = min(_round_up(M, row_align), 256)
    M_pad = _round_up(M, tm)
    if M_pad != M:
        x = jnp.pad(x, ((0, M_pad - M), (0, 0)))

    # Column tiling of the second matmul keeps W2's VMEM residency at B x tn.
    tn = _pick_col_tile(N)
    grid = (M_pad // tm, N // tn)

    elt = lambda a: a.dtype.itemsize
    # VMEM estimate: double-buffered inputs/outputs + f32 h scratch (+50% slack),
    # clamped to [32 MiB, 64 MiB] so it is valid on v5e/v6e/v7x.
    need = (2 * tm * K * elt(x) + 2 * K * B * elt(w1) + 2 * B * elt(b1)
            + 2 * B * tn * elt(w2) + 2 * tn * elt(b2) + 2 * tm * tn * elt(x)
            + tm * B * 4)
    vmem_limit = int(min(max(int(1.5 * need), 32 * 1024 * 1024),
                         64 * 1024 * 1024))
    # TODO(synk): add a trailing "arbitrary" K grid axis (accumulate x@W1 into
    # h scratch) if in_features*bottle no longer fits single-buffered on v7x.

    cost = pl.CostEstimate(
        flops=2 * M_pad * (K * B + B * N),
        transcendentals=M_pad * B,
        bytes_accessed=(M_pad * K * elt(x) + K * B * elt(w1) + B * elt(b1)
                        + B * N * elt(w2) + N * elt(b2) + M_pad * N * elt(x)),
    )

    mean = pl.pallas_call(
        prompt_encoder_kernel,
        out_shape=jax.ShapeDtypeStruct((M_pad, N), x.dtype),
        grid_spec=pltpu.PrefetchScalarGridSpec(
            num_scalar_prefetch=0,
            grid=grid,
            in_specs=[
                pl.BlockSpec((tm, K), lambda i, j: (i, 0)),   # x row tile
                pl.BlockSpec((K, B), lambda i, j: (0, 0)),    # W1 (whole, resident)
                pl.BlockSpec((1, B), lambda i, j: (0, 0)),    # b1
                pl.BlockSpec((B, tn), lambda i, j: (0, j)),   # W2 column tile
                pl.BlockSpec((1, tn), lambda i, j: (0, j)),   # b2 column tile
            ],
            out_specs=pl.BlockSpec((tm, tn), lambda i, j: (i, j)),
            scratch_shapes=[pltpu.VMEM((tm, B), jnp.float32)],  # h scratch
        ),
        compiler_params=pltpu.CompilerParams(
            dimension_semantics=("parallel", "arbitrary"),
            vmem_limit_bytes=vmem_limit,
        ),
        cost_estimate=cost,
    )(x, w1, b1, w2, b2)

    if M_pad != M:
        mean = mean[:M]
    logvar = None
    return mean, logvar


def init_params(key, in_features, bottle, out_features, dtype=jnp.bfloat16):
    """Deterministic init mimicking nn.Linear's default (uniform +/- 1/sqrt(fan_in))."""
    k1, k2, k3, k4 = jax.random.split(key, 4)
    bnd1 = 1.0 / math.sqrt(in_features)
    bnd2 = 1.0 / math.sqrt(bottle)
    w1 = jax.random.uniform(k1, (in_features, bottle), jnp.float32, -bnd1, bnd1)
    b1 = jax.random.uniform(k2, (1, bottle), jnp.float32, -bnd1, bnd1)
    w2 = jax.random.uniform(k3, (bottle, out_features), jnp.float32, -bnd2, bnd2)
    b2 = jax.random.uniform(k4, (1, out_features), jnp.float32, -bnd2, bnd2)
    return (w1.astype(dtype), b1.astype(dtype), w2.astype(dtype), b2.astype(dtype))


if __name__ == "__main__":
    # Small stand-ins for (input_size=4096, bottle=pe_bottle, output_size=4096).
    # M chosen to exercise row padding + multiple row tiles; OUT=384 exercises
    # multiple N tiles (tn=128) and the h-scratch reuse across j.
    M, IN, BOTTLE, OUT = 300, 256, 128, 384

    key = jax.random.PRNGKey(0)
    kx, kp = jax.random.split(key)
    x = jax.random.normal(kx, (M, IN), jnp.float32).astype(jnp.bfloat16)
    w1, b1, w2, b2 = init_params(kp, IN, BOTTLE, OUT, dtype=jnp.bfloat16)

    mean, logvar = prompt_encoder_forward(x, w1, b1, w2, b2)
    mean = jax.block_until_ready(mean)

    # Pure-JAX reference (same bf16 inputs, f32 accumulation, bf16 h cast).
    h_ref = jnp.dot(x, w1, preferred_element_type=jnp.float32) + b1.astype(jnp.float32)
    h_ref = h_ref * jax.nn.sigmoid(h_ref)
    y_ref = jnp.dot(h_ref.astype(jnp.bfloat16), w2,
                    preferred_element_type=jnp.float32) + b2.astype(jnp.float32)
    mean_ref = y_ref.astype(jnp.bfloat16)

    assert logvar is None
    assert mean.shape == (M, OUT) and mean.dtype == x.dtype
    err = jnp.max(jnp.abs(mean.astype(jnp.float32) - mean_ref.astype(jnp.float32)))
    assert float(err) < 2e-2, f"mismatch vs reference: max abs err = {float(err)}"

    print("KERNEL_OK")
</pallas_src>

<mosaic_0001>
module attributes {stable_mosaic.version = 11 : i64} {
  func.func @prompt_encoder_kernel(%arg0: i32, %arg1: i32, %arg2: memref<256x256xbf16, #tpu.memory_space<vmem>>, %arg3: memref<256x128xbf16, #tpu.memory_space<vmem>>, %arg4: memref<1x128xbf16, #tpu.memory_space<vmem>>, %arg5: memref<128x128xbf16, #tpu.memory_space<vmem>>, %arg6: memref<1x128xbf16, #tpu.memory_space<vmem>>, %arg7: memref<256x128xbf16, #tpu.memory_space<vmem>>, %arg8: memref<256x128xf32, #tpu.memory_space<vmem>>) attributes {dimension_semantics = [#tpu.dimension_semantics<parallel>, #tpu.dimension_semantics<arbitrary>], iteration_bounds = array<i64: 2, 3>, scalar_prefetch = 0 : i64, scratch_operands = 1 : i64, tpu.core_type = #tpu.core_type<tc>, window_params = [{transform_indices = @transform_0, window_bounds = array<i64: 256, 256>}, {pipeline_mode = #tpu.pipeline_mode<synchronous>, transform_indices = @transform_1, window_bounds = array<i64: 256, 128>}, {pipeline_mode = #tpu.pipeline_mode<synchronous>, transform_indices = @transform_2, window_bounds = array<i64: 1, 128>}, {transform_indices = @transform_3, window_bounds = array<i64: 128, 128>}, {transform_indices = @transform_4, window_bounds = array<i64: 1, 128>}, {transform_indices = @transform_5, window_bounds = array<i64: 256, 128>}]} {
    %c0_i32 = arith.constant 0 : i32
    %0 = arith.cmpi eq, %arg1, %c0_i32 : i32
    %1 = arith.extui %0 : i1 to i32
    %c0_i32_0 = arith.constant 0 : i32
    %2 = arith.cmpi ne, %1, %c0_i32_0 : i32
    scf.if %2 {
      %c0_8 = arith.constant 0 : index
      %c0_9 = arith.constant 0 : index
      %13 = vector.load %arg2[%c0_8, %c0_9] : memref<256x256xbf16, #tpu.memory_space<vmem>>, vector<256x256xbf16>
      %c0_10 = arith.constant 0 : index
      %c0_11 = arith.constant 0 : index
      %14 = vector.load %arg3[%c0_10, %c0_11] : memref<256x128xbf16, #tpu.memory_space<vmem>>, vector<256x128xbf16>
      %cst_12 = arith.constant dense<0.000000e+00> : vector<256x128xf32>
      %15 = tpu.matmul %13, %14, %cst_12 {dimension_numbers = #tpu.dot_dimension_numbers<[1], [0], [0], [1], [0, 0, 1, 1], [], []>} : vector<256x256xbf16>, vector<256x128xbf16>, vector<256x128xf32> -> vector<256x128xf32>
      %c0_13 = arith.constant 0 : index
      %c0_14 = arith.constant 0 : index
      %16 = vector.load %arg4[%c0_13, %c0_14] : memref<1x128xbf16, #tpu.memory_space<vmem>>, vector<1x128xbf16>
      %17 = arith.extf %16 : vector<1x128xbf16> to vector<1x128xf32>
      %18 = vector.broadcast %17 : vector<1x128xf32> to vector<256x128xf32>
      %19 = arith.addf %15, %18 : vector<256x128xf32>
      %20 = arith.negf %19 : vector<256x128xf32>
      %21 = math.exp %20 : vector<256x128xf32>
      %cst_15 = arith.constant 1.000000e+00 : f32
      %22 = vector.broadcast %cst_15 : f32 to vector<256x128xf32>
      %23 = arith.addf %22, %21 : vector<256x128xf32>
      %24 = arith.divf %22, %23 : vector<256x128xf32>
      %25 = arith.mulf %19, %24 : vector<256x128xf32>
      %c0_16 = arith.constant 0 : index
      %c0_17 = arith.constant 0 : index
      %26 = vector.load %arg8[%c0_16, %c0_17] : memref<256x128xf32, #tpu.memory_space<vmem>>, vector<256x128xf32>
      tpu.vector_store %arg8[%c0_16, %c0_17], %25 {strides = array<i32>} : memref<256x128xf32, #tpu.memory_space<vmem>>, vector<256x128xf32>,
    } else {
    }
    %c0 = arith.constant 0 : index
    %c0_1 = arith.constant 0 : index
    %3 = vector.load %arg8[%c0, %c0_1] : memref<256x128xf32, #tpu.memory_space<vmem>>, vector<256x128xf32>
    %4 = arith.truncf %3 : vector<256x128xf32> to vector<256x128xbf16>
    %c0_2 = arith.constant 0 : index
    %c0_3 = arith.constant 0 : index
    %5 = vector.load %arg5[%c0_2, %c0_3] : memref<128x128xbf16, #tpu.memory_space<vmem>>, vector<128x128xbf16>
    %cst = arith.constant dense<0.000000e+00> : vector<256x128xf32>
    %6 = tpu.matmul %4, %5, %cst {dimension_numbers = #tpu.dot_dimension_numbers<[1], [0], [0], [1], [0, 0, 1, 1], [], []>} : vector<256x128xbf16>, vector<128x128xbf16>, vector<256x128xf32> -> vector<256x128xf32>
    %c0_4 = arith.constant 0 : index
    %c0_5 = arith.constant 0 : index
    %7 = vector.load %arg6[%c0_4, %c0_5] : memref<1x128xbf16, #tpu.memory_space<vmem>>, vector<1x128xbf16>
    %8 = arith.extf %7 : vector<1x128xbf16> to vector<1x128xf32>
    %9 = vector.broadcast %8 : vector<1x128xf32> to vector<256x128xf32>
    %10 = arith.addf %6, %9 : vector<256x128xf32>
    %11 = arith.truncf %10 : vector<256x128xf32> to vector<256x128xbf16>
    %c0_6 = arith.constant 0 : index
    %c0_7 = arith.constant 0 : index
    %12 = vector.load %arg7[%c0_6, %c0_7] : memref<256x128xbf16, #tpu.memory_space<vmem>>, vector<256x128xbf16>
    tpu.vector_store %arg7[%c0_6, %c0_7], %11 {strides = array<i32>} : memref<256x128xbf16, #tpu.memory_space<vmem>>, vector<256x128xbf16>,
    return
  }
  func.func @transform_0(%arg0: i32, %arg1: i32) -> (i32, i32) {
    %c0_i32 = arith.constant 0 : i32
    %c0_i32_0 = arith.constant 0 : i32
    return %arg0, %c0_i32 : i32, i32
  }
  func.func @transform_1(%arg0: i32, %arg1: i32) -> (i32, i32) {
    %c0_i32 = arith.constant 0 : i32
    %c0_i32_0 = arith.constant 0 : i32
    %c0_i32_1 = arith.constant 0 : i32
    return %c0_i32, %c0_i32_0 : i32, i32
  }
  func.func @transform_2(%arg0: i32, %arg1: i32) -> (i32, i32) {
    %c0_i32 = arith.constant 0 : i32
    %c0_i32_0 = arith.constant 0 : i32
    %c0_i32_1 = arith.constant 0 : i32
    return %c0_i32, %c0_i32_0 : i32, i32
  }
  func.func @transform_3(%arg0: i32, %arg1: i32) -> (i32, i32) {
    %c0_i32 = arith.constant 0 : i32
    %c0_i32_0 = arith.constant 0 : i32
    return %c0_i32, %arg1 : i32, i32
  }
  func.func @transform_4(%arg0: i32, %arg1: i32) -> (i32, i32) {
    %c0_i32 = arith.constant 0 : i32
    %c0_i32_0 = arith.constant 0 : i32
    return %c0_i32, %arg1 : i32, i32
  }
  func.func @transform_5(%arg0: i32, %arg1: i32) -> (i32, i32) {
    %c0_i32 = arith.constant 0 : i32
    return %arg0, %arg1 : i32, i32
  }
}

</mosaic_0001>

<llo_original>
// kernel: tpu_custom_call.1
$region0: #{tpu_custom_call.1}
  #allocation0 [shape = 'u32[]', space=smem, size = 0x4, offset = 0x4, fixed_abs, tag = 'smem constant byte address 0x4 - core index']
  #allocation1 [shape = 'u32[144,128]{1,0:T(1,128)}', space=vmem, size = 0x12000, scoped, tag = 'internal scratch']
  #allocation2 [shape = 'f32[256,128]{1,0:T(8,128)}', space=vmem, size = 0x20000, scoped, tag = 'scratch operand']
  %s0 = inlined_call_operand.hbm [shape: bf16[512,256], index: 0, kind: input, shape index: {}]
  %s1 = inlined_call_operand.hbm [shape: bf16[256,128], index: 1, kind: input, shape index: {}]
  %s2 = inlined_call_operand.vmem [shape: bf16[1,128], index: 2, kind: input, shape index: {}]
  %s3 = inlined_call_operand.hbm [shape: bf16[128,384], index: 3, kind: input, shape index: {}]
  %s4 = inlined_call_operand.vmem [shape: bf16[1,384], index: 4, kind: input, shape index: {}]
  %s5 = inlined_call_operand.hbm [shape: bf16[512,384], index: 5, kind: output, shape index: {}]
  %s6 = sld [smem:[#allocation0]]
  $region69: #{tpu_custom_call.1} parent=0
    _
  %s8 = ssub.s32 1, %s6
  %s9 = scalar_select 0, %s8, %s6
  $region1: #{tpu_custom_call.1} parent=0
    #allocation3 [shape = 'u8[262144]{0}', space=vmem, size = 0x40000, scoped, tag = 'input window, operand 0']
    #allocation4 [shape = 's32[2]{0}', space=sflag, size = 0x8, scoped, tag = 'scoped memory for tpu_custom_call.1']
    #allocation5 [shape = 's32[2]{0}', space=sflag, size = 0x8, scoped, tag = 'scoped memory for tpu_custom_call.1']
    #allocation6 [shape = 'u8[65536]{0}', space=vmem, size = 0x10000, scoped, tag = 'input window, operand 1, single buffered']
    #allocation7 [shape = 's32[1]{0}', space=sflag, size = 0x4, scoped, tag = 'scoped memory for tpu_custom_call.1']
    #allocation8 [shape = 'u8[65536]{0}', space=vmem, size = 0x10000, scoped, tag = 'input window, operand 3']
    #allocation9 [shape = 'u8[131072]{0}', space=vmem, size = 0x20000, scoped, tag = 'output window, operand 0']
    %10 = vsyncpa [#allocation4], 0
    %s11 = scalar_lea.sflag [#allocation4], 1
    %12 = vsyncpa %s11, 0
    %13 = vsyncpa [#allocation7], 0
    %14 = vsyncpa [#allocation5], 0
    %s15 = scalar_lea.sflag [#allocation5], 1
    %16 = vsyncpa %s15, 0
    loop: start=0, step=1, limit=8
    $region2: #{tpu_custom_call.1} parent=1 // loop_pre_header
      _
    $region3: #{tpu_custom_call.1} parent=1 // loop_header
      %s18 = sphi 0, %s22
      %p19 = scmp.ge.s32.totalorder %s18, 8
      %s25 = sphi 0, %s37
      %s26 = sphi 0, %s33
      %s27 = sphi 0, %s25
      %s28 = sphi 0, %s26
      %s29 = sphi 0, %s27
      %s30 = sphi 0, %s28
      %s40 = sphi 0, %s42
      %s43 = sphi 0, %s40
      %s44 = sphi 0, %s43
      %s60 = sphi 0, %s44
      %s64 = sphi 0, %s64
      %s66 = sphi 0, %s64
      %s67 = sphi 0, %s66
      %s81 = sphi 0, %s67
      %s85 = sphi 0, %s85
      %s87 = sphi 0, %s85
      %s88 = sphi 0, %s87
      %s102 = sphi 0, %s88
      %s108 = sphi 0, %s110
      %s111 = sphi 0, %s108
      %s112 = sphi 0, %s111
      %s128 = sphi 0, %s112
      %s134 = sphi 0, %s136
      %s137 = sphi 0, %s134
      %s138 = sphi 0, %s137
      %s154 = sphi 0, %s138
      %s162 = sphi 0, %s164
      %s165 = sphi 0, %s162
      %s166 = sphi 0, %s165
      %s182 = sphi 0, %s166
    $region4: #{tpu_custom_call.1} parent=1 // loop_header_branch
      %21 = sbr.rel (%p19) target = $region8
    $region5: #{tpu_custom_call.1} parent=1 // loop_body
      %s23 = ssub.s32 %s18, 1
      %s24 = ssub.s32 %s18, 2
      %s31 = sadd.s32 1, %s26
      %p32 = scmp.ge.s32.totalorder %s31, 3
      %s33 = scalar_select %p32, 0, %s31
      %s34 = sadd.s32 1, %s25
      %s35 = scalar_select %p32, %s34, %s25
      %p36 = scmp.ge.s32.totalorder %s35, 2
      %s37 = scalar_select %p36, 0, %s35
      %s38 = ssub.s32 %s25, %s37
      %p39 = scmp.eq.s32.totalorder %s38, 0
      %s41 = sadd.s32 %s40, 1
      %s42 = scalar_select %p39, %s40, %s41
      %p45 = pneg %p39
      %p46 = scmp.eq.s32.totalorder %s18, 5
      %p47 = por %p45, %p46
      %p48 = scmp.ne.s32.totalorder %s40, %s43
      %p49 = scmp.eq.s32.totalorder %s18, 0
      %p50 = por %p48, %p49
      %p51 = scmp.ne.s32.totalorder %s40, %s43
      %p52 = scmp.eq.s32.totalorder %s23, 5
      %p53 = por %p51, %p52
      %p54 = scmp.ne.s32.totalorder %s43, %s44
      %p55 = scmp.eq.s32.totalorder %s23, 0
      %p56 = por %p54, %p55
      %p57 = scmp.ne.s32.totalorder %s43, %s44
      %p58 = scmp.eq.s32.totalorder %s24, 5
      %p59 = por %p57, %p58
      %p61 = scmp.ne.s32.totalorder %s44, %s60
      %p62 = scmp.eq.s32.totalorder %s24, 0
      %p63 = por %p61, %p62
      %s65 = sadd.s32 %s64, 1
      %p68 = scmp.eq.s32.totalorder %s18, 5
      %p69 = scmp.ne.s32.totalorder %s64, %s66
      %p70 = scmp.eq.s32.totalorder %s18, 0
      %p71 = por %p69, %p70
      %p72 = scmp.ne.s32.totalorder %s64, %s66
      %p73 = scmp.eq.s32.totalorder %s23, 5
      %p74 = por %p72, %p73
      %p75 = scmp.ne.s32.totalorder %s66, %s67
      %p76 = scmp.eq.s32.totalorder %s23, 0
      %p77 = por %p75, %p76
      %p78 = scmp.ne.s32.totalorder %s66, %s67
      %p79 = scmp.eq.s32.totalorder %s24, 5
      %p80 = por %p78, %p79
      %p82 = scmp.ne.s32.totalorder %s67, %s81
      %p83 = scmp.eq.s32.totalorder %s24, 0
      %p84 = por %p82, %p83
      %s86 = sadd.s32 %s85, 1
      %p89 = scmp.eq.s32.totalorder %s18, 5
      %p90 = scmp.ne.s32.totalorder %s85, %s87
      %p91 = scmp.eq.s32.totalorder %s18, 0
      %p92 = por %p90, %p91
      %p93 = scmp.ne.s32.totalorder %s85, %s87
      %p94 = scmp.eq.s32.totalorder %s23, 5
      %p95 = por %p93, %p94
      %p96 = scmp.ne.s32.totalorder %s87, %s88
      %p97 = scmp.eq.s32.totalorder %s23, 0
      %p98 = por %p96, %p97
      %p99 = scmp.ne.s32.totalorder %s87, %s88
      %p100 = scmp.eq.s32.totalorder %s24, 5
      %p101 = por %p99, %p100
      %p103 = scmp.ne.s32.totalorder %s88, %s102
      %p104 = scmp.eq.s32.totalorder %s24, 0
      %p105 = por %p103, %p104
      %s106 = ssub.s32 %s26, %s33
      %p107 = scmp.eq.s32.totalorder %s106, 0
      %s109 = sadd.s32 %s108, 1
      %s110 = scalar_select %p107, %s108, %s109
      %p113 = pneg %p107
      %p114 = scmp.eq.s32.totalorder %s18, 5
      %p115 = por %p113, %p114
      %p116 = scmp.ne.s32.totalorder %s108, %s111
      %p117 = scmp.eq.s32.totalorder %s18, 0
      %p118 = por %p116, %p117
      %p119 = scmp.ne.s32.totalorder %s108, %s111
      %p120 = scmp.eq.s32.totalorder %s23, 5
      %p121 = por %p119, %p120
      %p122 = scmp.ne.s32.totalorder %s111, %s112
      %p123 = scmp.eq.s32.totalorder %s23, 0
      %p124 = por %p122, %p123
      %p125 = scmp.ne.s32.totalorder %s111, %s112
      %p126 = scmp.eq.s32.totalorder %s24, 5
      %p127 = por %p125, %p126
      %p129 = scmp.ne.s32.totalorder %s112, %s128
      %p130 = scmp.eq.s32.totalorder %s24, 0
      %p131 = por %p129, %p130
      %s132 = ssub.s32 %s26, %s33
      %p133 = scmp.eq.s32.totalorder %s132, 0
      %s135 = sadd.s32 %s134, 1
      %s136 = scalar_select %p133, %s134, %s135
      %p139 = pneg %p133
      %p140 = scmp.eq.s32.totalorder %s18, 5
      %p141 = por %p139, %p140
      %p142 = scmp.ne.s32.totalorder %s134, %s137
      %p143 = scmp.eq.s32.totalorder %s18, 0
      %p144 = por %p142, %p143
      %p145 = scmp.ne.s32.totalorder %s134, %s137
      %p146 = scmp.eq.s32.totalorder %s23, 5
      %p147 = por %p145, %p146
      %p148 = scmp.ne.s32.totalorder %s137, %s138
      %p149 = scmp.eq.s32.totalorder %s23, 0
      %p150 = por %p148, %p149
      %p151 = scmp.ne.s32.totalorder %s137, %s138
      %p152 = scmp.eq.s32.totalorder %s24, 5
      %p153 = por %p151, %p152
      %p155 = scmp.ne.s32.totalorder %s138, %s154
      %p156 = scmp.eq.s32.totalorder %s24, 0
      %p157 = por %p155, %p156
      %s158 = ssub.s32 %s25, %s37
      %s159 = ssub.s32 %s26, %s33
      %s160 = sor.u32 %s158, %s159
      %p161 = scmp.eq.s32.totalorder %s160, 0
      %s163 = sadd.s32 %s162, 1
      %s164 = scalar_select %p161, %s162, %s163
      %p167 = pneg %p161
      %p168 = scmp.eq.s32.totalorder %s18, 5
      %p169 = por %p167, %p168
      %p170 = scmp.ne.s32.totalorder %s162, %s165
      %p171 = scmp.eq.s32.totalorder %s18, 0
      %p172 = por %p170, %p171
      %p173 = scmp.ne.s32.totalorder %s162, %s165
      %p174 = scmp.eq.s32.totalorder %s23, 5
      %p175 = por %p173, %p174
      %p176 = scmp.ne.s32.totalorder %s165, %s166
      %p177 = scmp.eq.s32.totalorder %s23, 0
      %p178 = por %p176, %p177
      %p179 = scmp.ne.s32.totalorder %s165, %s166
      %p180 = scmp.eq.s32.totalorder %s24, 5
      %p181 = por %p179, %p180
      %p183 = scmp.ne.s32.totalorder %s166, %s182
      %p184 = scmp.eq.s32.totalorder %s24, 0
      %p185 = por %p183, %p184
      %p186 = scmp.le.s32.totalorder 1, %s18
      %p187 = scmp.lt.s32.totalorder %s18, 7
      %p188 = pnand %p186, %p187
      %p189 = pneg %p188
      // Predicated region
      $region9: #{tpu_custom_call.1} parent=5 // pred_check
        _
      $region10: #{tpu_custom_call.1} parent=5 // pred_check_branch
        %191 = sbr.rel (%p188) target = $region12
      $region11: #{tpu_custom_call.1} parent=5 // pred_region
        %s192 = ssub.s32 %s18, 1
        // Predicated region
        $region13: #{tpu_custom_call.1} parent=11 // pred_check
          %p193 = pneg %p77
        $region14: #{tpu_custom_call.1} parent=11 // pred_check_branch
          %195 = sbr.rel (%p193) target = $region16
        $region15: #{tpu_custom_call.1} parent=11 // pred_region
          %s197 = ssub.s32 2048, 2048
          %198 = vsyncadd [#allocation7], %s197
          %s199 = sshll.u32 [#allocation6], 4
          %s200 = int_to_ptr.vmem [resolvable:$true] %s199
          %205 = dma.hbm_to_vmem [thread:$0]  %s1, 2048, %s200, [#allocation7], 64, 64, 4
        $region16: #{tpu_custom_call.1} parent=11 // pred_fallthru
          _
        // Predicated region
        $region17: #{tpu_custom_call.1} parent=11 // pred_check
          %p206 = pneg %p98
        $region18: #{tpu_custom_call.1} parent=11 // pred_check_branch
          %208 = sbr.rel (%p206) target = $region20
        $region19: #{tpu_custom_call.1} parent=11 // pred_region
          _
        $region20: #{tpu_custom_call.1} parent=11 // pred_fallthru
          _
      $region12: #{tpu_custom_call.1} parent=5 // pred_fallthru
        _
      %p209 = scmp.lt.s32.totalorder %s18, 6
      // Predicated region
      $region21: #{tpu_custom_call.1} parent=5 // pred_check
        %p210 = pneg %p209
      $region22: #{tpu_custom_call.1} parent=5 // pred_check_branch
        %212 = sbr.rel (%p210) target = $region24
      $region23: #{tpu_custom_call.1} parent=5 // pred_region
        // Predicated region
        $region25: #{tpu_custom_call.1} parent=23 // pred_check
          %p213 = pneg %p50
        $region26: #{tpu_custom_call.1} parent=23 // pred_check_branch
          %215 = sbr.rel (%p213) target = $region28
        $region27: #{tpu_custom_call.1} parent=23 // pred_region
          %s216 = sand.u32 %s18, 1
          %s217 = scalar_lea.sflag [#allocation4], %s216
          %s218 = sand.u32 %s40, 1
          %s219 = smul.addr %s218, 256
          %s220 = scalar_lea.vmem [#allocation3], %s219
          %s221 = smul.u32 32, %s25
          %s223 = ssub.s32 4096, 4096
          %224 = vsyncadd %s217, %s223
          %s225 = smul.addr %s221, 2
          %s226 = smul.addr %s225, 64
          %s227 = scalar_lea.hbm %s0, %s226
          %s228 = sshll.u32 %s220, 4
          %s229 = int_to_ptr.vmem [resolvable:$true] %s228
          %234 = dma.hbm_to_vmem [thread:$0]  %s227, 4096, %s229, %s217, 128, 128, 8
        $region28: #{tpu_custom_call.1} parent=23 // pred_fallthru
          _
        // Predicated region
        $region29: #{tpu_custom_call.1} parent=23 // pred_check
          %p235 = pneg %p118
        $region30: #{tpu_custom_call.1} parent=23 // pred_check_branch
          %237 = sbr.rel (%p235) target = $region32
        $region31: #{tpu_custom_call.1} parent=23 // pred_region
          %s238 = sand.u32 %s18, 1
          %s239 = scalar_lea.sflag [#allocation4], %s238
          %s240 = sand.u32 %s108, 1
          %s241 = smul.addr %s240, 64
          %s242 = scalar_lea.vmem [#allocation8], %s241
          %s244 = ssub.s32 1024, 1024
          %245 = vsyncadd %s239, %s244
          %s246 = smul.addr %s26, 64
          %s247 = scalar_lea.hbm %s3, %s246
          %s248 = sshll.u32 %s242, 4
          %s249 = int_to_ptr.vmem [resolvable:$true] %s248
          %254 = dma.hbm_to_vmem [thread:$0]  %s247, 1024, %s249, %s239, 192, 64, 4
        $region32: #{tpu_custom_call.1} parent=23 // pred_fallthru
          _
        // Predicated region
        $region33: #{tpu_custom_call.1} parent=23 // pred_check
          %p255 = pneg %p144
        $region34: #{tpu_custom_call.1} parent=23 // pred_check_branch
          %257 = sbr.rel (%p255) target = $region36
        $region35: #{tpu_custom_call.1} parent=23 // pred_region
          %p258 = scmp.lt.s32.totalorder %s26, 2
          %s259 = scalar_select %p258, %s26, 2
          %s260 = scalar_lea.vmem %s4, %s259
        $region36: #{tpu_custom_call.1} parent=23 // pred_fallthru
          _
      $region24: #{tpu_custom_call.1} parent=5 // pred_fallthru
        _
      %p261 = scmp.le.s32.totalorder 1, %s18
      %p262 = scmp.lt.s32.totalorder %s18, 7
      %p263 = pnand %p261, %p262
      %p264 = pneg %p263
      // Predicated region
      $region37: #{tpu_custom_call.1} parent=5 // pred_check
        _
      $region38: #{tpu_custom_call.1} parent=5 // pred_check_branch
        %266 = sbr.rel (%p263) target = $region40
      $region39: #{tpu_custom_call.1} parent=5 // pred_region
        %s267 = ssub.s32 %s18, 1
        %s268 = sand.u32 %s23, 1
        %s269 = scalar_lea.sflag [#allocation4], %s268
        %s270 = sand.u32 %s43, 1
        %s271 = smul.addr %s270, 256
        %s272 = scalar_lea.vmem [#allocation3], %s271
        // Predicated region
        $region41: #{tpu_custom_call.1} parent=39 // pred_check
          %p273 = pneg %p56
        $region42: #{tpu_custom_call.1} parent=39 // pred_check_branch
          %275 = sbr.rel (%p273) target = $region44
        $region43: #{tpu_custom_call.1} parent=39 // pred_region
          %276 = dma.done %s269, 4096
        $region44: #{tpu_custom_call.1} parent=39 // pred_fallthru
          _
        // Predicated region
        $region45: #{tpu_custom_call.1} parent=39 // pred_check
          %p277 = pneg %p77
        $region46: #{tpu_custom_call.1} parent=39 // pred_check_branch
          %279 = sbr.rel (%p277) target = $region48
        $region47: #{tpu_custom_call.1} parent=39 // pred_region
          %280 = dma.done [#allocation7], 2048
        $region48: #{tpu_custom_call.1} parent=39 // pred_fallthru
          _
        %s281 = sand.u32 %s23, 1
        %s282 = scalar_lea.sflag [#allocation4], %s281
        %s283 = sand.u32 %s111, 1
        %s284 = smul.addr %s283, 64
        %s285 = scalar_lea.vmem [#allocation8], %s284
        // Predicated region
        $region49: #{tpu_custom_call.1} parent=39 // pred_check
          %p286 = pneg %p124
        $region50: #{tpu_custom_call.1} parent=39 // pred_check_branch
          %288 = sbr.rel (%p286) target = $region52
        $region51: #{tpu_custom_call.1} parent=39 // pred_region
          %289 = dma.done %s282, 1024
        $region52: #{tpu_custom_call.1} parent=39 // pred_fallthru
          _
        %s290 = sand.u32 %s23, 1
        %s291 = scalar_lea.sflag [#allocation4], %s290
        %s292 = sand.u32 %s43, 1
        %s293 = smul.addr %s292, 256
        %s294 = scalar_lea.vmem [#allocation3], %s293
        %p295 = pneg %p56
        %p296 = pneg %p53
        %p297 = pneg %p77
        %p298 = pneg %p74
        %p299 = pneg %p98
        %p300 = pneg %p95
        %s301 = sand.u32 %s23, 1
        %s302 = scalar_lea.sflag [#allocation4], %s301
        %s303 = sand.u32 %s111, 1
        %s304 = smul.addr %s303, 64
        %s305 = scalar_lea.vmem [#allocation8], %s304
        %p306 = pneg %p124
        %p307 = pneg %p121
        %p308 = scmp.lt.s32.totalorder %s28, 2
        %s309 = scalar_select %p308, %s28, 2
        %s310 = scalar_lea.vmem %s4, %s309
        %p311 = pneg %p150
        %p312 = pneg %p147
        %p313 = pneg %p178
        %p314 = pneg %p175
        %s315 = sand.u32 %s165, 1
        %s316 = scalar_lea.sflag [#allocation5], %s315
        %s317 = sand.u32 %s165, 1
        %s318 = smul.addr %s317, 128
        %s319 = scalar_lea.vmem [#allocation9], %s318
        %s320 = smul.u32 32, %s27
        %p321 = scmp.lt.s32.totalorder %s28, 2
        %s322 = scalar_select %p321, %s28, 2
        %s323 = scalar_lea.vmem %s4, %s322
        %s324 = smul.u32 32, %s27
        %p326 = scmp.eq.s32.totalorder %s28, 0
        // Predicated region
        $region53: #{tpu_custom_call.1} parent=39 // pred_check
          %p327 = pneg %p326
        $region54: #{tpu_custom_call.1} parent=39 // pred_check_branch
          %329 = sbr.rel (%p327) target = $region56
        $region55: #{tpu_custom_call.1} parent=39 // pred_region
          %v330 = vld [vmem:[%s272] sm:$0xff]
          %v331 = vld [vmem:[%s272 + $0x8] sm:$0xff]
          %v332 = vld [vmem:[%s272 + $0x10] sm:$0xff]
          %v333 = vld [vmem:[%s272 + $0x18] sm:$0xff]
          %v334 = vld [vmem:[%s272 + $0x20] sm:$0xff]
          %v335 = vld [vmem:[%s272 + $0x28] sm:$0xff]
          %v336 = vld [vmem:[%s272 + $0x30] sm:$0xff]
          %v337 = vld [vmem:[%s272 + $0x38] sm:$0xff]
          %v338 = vld [vmem:[%s272 + $0x40] sm:$0xff]
          %v339 = vld [vmem:[%s272 + $0x48] sm:$0xff]
          %v340 = vld [vmem:[%s272 + $0x50] sm:$0xff]
          %v341 = vld [vmem:[%s272 + $0x58] sm:$0xff]
          %v342 = vld [vmem:[%s272 + $0x60] sm:$0xff]
          %v343 = vld [vmem:[%s272 + $0x68] sm:$0xff]
          %v344 = vld [vmem:[%s272 + $0x70] sm:$0xff]
          %v345 = vld [vmem:[%s272 + $0x78] sm:$0xff]
          %v346 = vld [vmem:[%s272 + $0x80] sm:$0xff]
          %v347 = vld [vmem:[%s272 + $0x88] sm:$0xff]
          %v348 = vld [vmem:[%s272 + $0x90] sm:$0xff]
          %v349 = vld [vmem:[%s272 + $0x98] sm:$0xff]
          %v350 = vld [vmem:[%s272 + $0xa0] sm:$0xff]
          %v351 = vld [vmem:[%s272 + $0xa8] sm:$0xff]
          %v352 = vld [vmem:[%s272 + $0xb0] sm:$0xff]
          %v353 = vld [vmem:[%s272 + $0xb8] sm:$0xff]
          %v354 = vld [vmem:[%s272 + $0xc0] sm:$0xff]
          %v355 = vld [vmem:[%s272 + $0xc8] sm:$0xff]
          %v356 = vld [vmem:[%s272 + $0xd0] sm:$0xff]
          %v357 = vld [vmem:[%s272 + $0xd8] sm:$0xff]
          %v358 = vld [vmem:[%s272 + $0xe0] sm:$0xff]
          %v359 = vld [vmem:[%s272 + $0xe8] sm:$0xff]
          %v360 = vld [vmem:[%s272 + $0xf0] sm:$0xff]
          %v361 = vld [vmem:[%s272 + $0xf8] sm:$0xff]
          %v362 = vld [vmem:[#allocation6] sm:$0xf]
          %v363 = vld [vmem:[#allocation6 + $0x4] sm:$0xf]
          %v364 = vld [vmem:[#allocation6 + $0x8] sm:$0xf]
          %v365 = vld [vmem:[#allocation6 + $0xc] sm:$0xf]
          %v366 = vld [vmem:[#allocation6 + $0x10] sm:$0xf]
          %v367 = vld [vmem:[#allocation6 + $0x14] sm:$0xf]
          %v368 = vld [vmem:[#allocation6 + $0x18] sm:$0xf]
          %v369 = vld [vmem:[#allocation6 + $0x1c] sm:$0xf]
          %v370 = vld [vmem:[#allocation6 + $0x20] sm:$0xf]
          %v371 = vld [vmem:[#allocation6 + $0x24] sm:$0xf]
          %v372 = vld [vmem:[#allocation6 + $0x28] sm:$0xf]
          %v373 = vld [vmem:[#allocation6 + $0x2c] sm:$0xf]
          %v374 = vld [vmem:[#allocation6 + $0x30] sm:$0xf]
          %v375 = vld [vmem:[#allocation6 + $0x34] sm:$0xf]
          %v376 = vld [vmem:[#allocation6 + $0x38] sm:$0xf]
          %v377 = vld [vmem:[#allocation6 + $0x3c] sm:$0xf]
          %v378 = vld [vmem:[#allocation6 + $0x40] sm:$0xf]
          %v379 = vld [vmem:[#allocation6 + $0x44] sm:$0xf]
          %v380 = vld [vmem:[#allocation6 + $0x48] sm:$0xf]
          %v381 = vld [vmem:[#allocation6 + $0x4c] sm:$0xf]
          %v382 = vld [vmem:[#allocation6 + $0x50] sm:$0xf]
          %v383 = vld [vmem:[#allocation6 + $0x54] sm:$0xf]
          %v384 = vld [vmem:[#allocation6 + $0x58] sm:$0xf]
          %v385 = vld [vmem:[#allocation6 + $0x5c] sm:$0xf]
          %v386 = vld [vmem:[#allocation6 + $0x60] sm:$0xf]
          %v387 = vld [vmem:[#allocation6 + $0x64] sm:$0xf]
          %v388 = vld [vmem:[#allocation6 + $0x68] sm:$0xf]
          %v389 = vld [vmem:[#allocation6 + $0x6c] sm:$0xf]
          %v390 = vld [vmem:[#allocation6 + $0x70] sm:$0xf]
          %v391 = vld [vmem:[#allocation6 + $0x74] sm:$0xf]
          %v392 = vld [vmem:[#allocation6 + $0x78] sm:$0xf]
          %v393 = vld [vmem:[#allocation6 + $0x7c] sm:$0xf]
          %v394 = vld [vmem:[%s2] sm:$0x1]
          %v395 = vunpack.c.l.bf16 %v394
          %v396 = vlaneseq
          %v397 = vshrl.u32 %v396, 7
          %v398 = vsub.s32 0, %v397
          %v399 = vrot.slane %v395, %v398
          %v432 = vunpack.c.l.b16 %v330
          %v433 = vunpack.c.h.b16 %v330
          %v434 = vunpack.c.l.b16 %v331
          %v435 = vunpack.c.h.b16 %v331
          %v436 = vunpack.c.l.b16 %v332
          %v437 = vunpack.c.h.b16 %v332
          %v438 = vunpack.c.l.b16 %v333
          %v439 = vunpack.c.h.b16 %v333
          %v440 = vunpack.c.l.b16 %v334
          %v441 = vunpack.c.h.b16 %v334
          %v442 = vunpack.c.l.b16 %v335
          %v443 = vunpack.c.h.b16 %v335
          %v444 = vunpack.c.l.b16 %v336
          %v445 = vunpack.c.h.b16 %v336
          %v446 = vunpack.c.l.b16 %v337
          %v447 = vunpack.c.h.b16 %v337
          %v448 = vunpack.c.l.b16 %v338
          %v449 = vunpack.c.h.b16 %v338
          %v450 = vunpack.c.l.b16 %v339
          %v451 = vunpack.c.h.b16 %v339
          %v452 = vunpack.c.l.b16 %v340
          %v453 = vunpack.c.h.b16 %v340
          %v454 = vunpack.c.l.b16 %v341
          %v455 = vunpack.c.h.b16 %v341
          %v456 = vunpack.c.l.b16 %v342
          %v457 = vunpack.c.h.b16 %v342
          %v458 = vunpack.c.l.b16 %v343
          %v459 = vunpack.c.h.b16 %v343
          %v460 = vunpack.c.l.b16 %v344
          %v461 = vunpack.c.h.b16 %v344
          %v462 = vunpack.c.l.b16 %v345
          %v463 = vunpack.c.h.b16 %v345
          %v464 = vunpack.c.l.b16 %v346
          %v465 = vunpack.c.h.b16 %v346
          %v466 = vunpack.c.l.b16 %v347
          %v467 = vunpack.c.h.b16 %v347
          %v468 = vunpack.c.l.b16 %v348
          %v469 = vunpack.c.h.b16 %v348
          %v470 = vunpack.c.l.b16 %v349
          %v471 = vunpack.c.h.b16 %v349
          %v472 = vunpack.c.l.b16 %v350
          %v473 = vunpack.c.h.b16 %v350
          %v474 = vunpack.c.l.b16 %v351
          %v475 = vunpack.c.h.b16 %v351
          %v476 = vunpack.c.l.b16 %v352
          %v477 = vunpack.c.h.b16 %v352
          %v478 = vunpack.c.l.b16 %v353
          %v479 = vunpack.c.h.b16 %v353
          %v480 = vunpack.c.l.b16 %v354
          %v481 = vunpack.c.h.b16 %v354
          %v482 = vunpack.c.l.b16 %v355
          %v483 = vunpack.c.h.b16 %v355
          %v484 = vunpack.c.l.b16 %v356
          %v485 = vunpack.c.h.b16 %v356
          %v486 = vunpack.c.l.b16 %v357
          %v487 = vunpack.c.h.b16 %v357
          %v488 = vunpack.c.l.b16 %v358
          %v489 = vunpack.c.h.b16 %v358
          %v490 = vunpack.c.l.b16 %v359
          %v491 = vunpack.c.h.b16 %v359
          %v492 = vunpack.c.l.b16 %v360
          %v493 = vunpack.c.h.b16 %v360
          %v494 = vunpack.c.l.b16 %v361
          %v495 = vunpack.c.h.b16 %v361
          %v496 = vpack.c.b16 %v434, %v432
          %v497 = vpack.c.b16 %v435, %v433
          %v498 = vpack.c.b16 %v438, %v436
          %v499 = vpack.c.b16 %v439, %v437
          %v500 = vpack.c.b16 %v442, %v440
          %v501 = vpack.c.b16 %v443, %v441
          %v502 = vpack.c.b16 %v446, %v444
          %v503 = vpack.c.b16 %v447, %v445
          %v504 = vpack.c.b16 %v450, %v448
          %v505 = vpack.c.b16 %v451, %v449
          %v506 = vpack.c.b16 %v454, %v452
          %v507 = vpack.c.b16 %v455, %v453
          %v508 = vpack.c.b16 %v458, %v456
          %v509 = vpack.c.b16 %v459, %v457
          %v510 = vpack.c.b16 %v462, %v460
          %v511 = vpack.c.b16 %v463, %v461
          %v512 = vpack.c.b16 %v466, %v464
          %v513 = vpack.c.b16 %v467, %v465
          %v514 = vpack.c.b16 %v470, %v468
          %v515 = vpack.c.b16 %v471, %v469
          %v516 = vpack.c.b16 %v474, %v472
          %v517 = vpack.c.b16 %v475, %v473
          %v518 = vpack.c.b16 %v478, %v476
          %v519 = vpack.c.b16 %v479, %v477
          %v520 = vpack.c.b16 %v482, %v480
          %v521 = vpack.c.b16 %v483, %v481
          %v522 = vpack.c.b16 %v486, %v484
          %v523 = vpack.c.b16 %v487, %v485
          %v524 = vpack.c.b16 %v490, %v488
          %v525 = vpack.c.b16 %v491, %v489
          %v526 = vpack.c.b16 %v494, %v492
          %v527 = vpack.c.b16 %v495, %v493
          %v592 = vunpack.c.l.b16 %v362
          %v593 = vunpack.c.l.b16 %v363
          %v594 = vunpack.c.l.b16 %v364
          %v595 = vunpack.c.l.b16 %v365
          %v596 = vunpack.c.l.b16 %v366
          %v597 = vunpack.c.l.b16 %v367
          %v598 = vunpack.c.l.b16 %v368
          %v599 = vunpack.c.l.b16 %v369
          %v600 = vunpack.c.l.b16 %v370
          %v601 = vunpack.c.l.b16 %v371
          %v602 = vunpack.c.l.b16 %v372
          %v603 = vunpack.c.l.b16 %v373
          %v604 = vunpack.c.l.b16 %v374
          %v605 = vunpack.c.l.b16 %v375
          %v606 = vunpack.c.l.b16 %v376
          %v607 = vunpack.c.l.b16 %v377
          %v608 = vunpack.c.l.b16 %v378
          %v609 = vunpack.c.l.b16 %v379
          %v610 = vunpack.c.l.b16 %v380
          %v611 = vunpack.c.l.b16 %v381
          %v612 = vunpack.c.l.b16 %v382
          %v613 = vunpack.c.l.b16 %v383
          %v614 = vunpack.c.l.b16 %v384
          %v615 = vunpack.c.l.b16 %v385
          %v616 = vunpack.c.l.b16 %v386
          %v617 = vunpack.c.l.b16 %v387
          %v618 = vunpack.c.l.b16 %v388
          %v619 = vunpack.c.l.b16 %v389
          %v620 = vunpack.c.l.b16 %v390
          %v621 = vunpack.c.l.b16 %v391
          %v622 = vunpack.c.l.b16 %v392
          %v623 = vunpack.c.l.b16 %v393
          %v624 = vpack.c.b16 %v593, %v592
          %v625 = vpack.c.b16 %v595, %v594
          %v626 = vpack.c.b16 %v597, %v596
          %v627 = vpack.c.b16 %v599, %v598
          %v628 = vpack.c.b16 %v601, %v600
          %v629 = vpack.c.b16 %v603, %v602
          %v630 = vpack.c.b16 %v605, %v604
          %v631 = vpack.c.b16 %v607, %v606
          %v632 = vpack.c.b16 %v609, %v608
          %v633 = vpack.c.b16 %v611, %v610
          %v634 = vpack.c.b16 %v613, %v612
          %v635 = vpack.c.b16 %v615, %v614
          %v636 = vpack.c.b16 %v617, %v616
          %v637 = vpack.c.b16 %v619, %v618
          %v638 = vpack.c.b16 %v621, %v620
          %v639 = vpack.c.b16 %v623, %v622
          %656 = vmatprep.subr.bf16.mxu0 0
          %657 = vmatpush1.bf16.msra.mxu0 %v624
          %658 = vmatprep.subr.bf16.mxu0 0
          %659 = vmatpush1.bf16.msra.mxu0 %v625
          %660 = vmatprep.subr.bf16.mxu0 0
          %661 = vmatpush1.bf16.msra.mxu0 %v626
          %662 = vmatprep.subr.bf16.mxu0 0
          %663 = vmatpush1.bf16.msra.mxu0 %v627
          %664 = vmatprep.subr.bf16.mxu0 0
          %665 = vmatpush1.bf16.msra.mxu0 %v628
          %666 = vmatprep.subr.bf16.mxu0 0
          %667 = vmatpush1.bf16.msra.mxu0 %v629
          %668 = vmatprep.subr.bf16.mxu0 0
          %669 = vmatpush1.bf16.msra.mxu0 %v630
          %670 = vmatprep.subr.bf16.mxu0 0
          %671 = vmatpush1.bf16.msra.mxu0 %v631
          %672 = vmatprep.subr.bf16.mxu0 0
          %673 = vmatpush1.bf16.msra.mxu0 %v632
          %674 = vmatprep.subr.bf16.mxu0 0
          %675 = vmatpush1.bf16.msra.mxu0 %v633
          %676 = vmatprep.subr.bf16.mxu0 0
          %677 = vmatpush1.bf16.msra.mxu0 %v634
          %678 = vmatprep.subr.bf16.mxu0 0
          %679 = vmatpush1.bf16.msra.mxu0 %v635
          %680 = vmatprep.subr.bf16.mxu0 0
          %681 = vmatpush1.bf16.msra.mxu0 %v636
          %682 = vmatprep.subr.bf16.mxu0 0
          %683 = vmatpush1.bf16.msra.mxu0 %v637
          %684 = vmatprep.subr.bf16.mxu0 0
          %685 = vmatpush1.bf16.msra.mxu0 %v638
          %686 = vmatprep.subr.bf16.mxu0 0
          %687 = vmatpush1.bf16.msra.mxu0 %v639
          %688 = vmatprep.mubr.bf16.mxu0 %v497
          %689 = vmatmul.mubr.bf16.gmra.mrb[0].mxu0 %v496
          %v690 = vpop.f32.mrb[0].mxu0
          %v691 = vadd.f32 %v399, %v690
          %v692 = vpop.f32.mrb[0].mxu0
          %v693 = vpop.f32.mrb[0].mxu0
          %v694 = vadd.f32 %v399, %v693
          %v695 = vpop.f32.mrb[0].mxu0
          %696 = vmatprep.mubr.bf16.mxu0 %v499
          %697 = vmatmul.mubr.bf16.gmra.mrb[0].mxu0 %v498
          %v698 = vpop.f32.mrb[0].mxu0
          %v699 = vadd.f32 %v399, %v698
          %v700 = vpop.f32.mrb[0].mxu0
          %v701 = vpop.f32.mrb[0].mxu0
          %v702 = vadd.f32 %v399, %v701
          %v703 = vpop.f32.mrb[0].mxu0
          %704 = vmatprep.mubr.bf16.mxu0 %v501
          %705 = vmatmul.mubr.bf16.gmra.mrb[0].mxu0 %v500
          %v706 = vpop.f32.mrb[0].mxu0
          %v707 = vadd.f32 %v399, %v706
          %v708 = vpop.f32.mrb[0].mxu0
          %v709 = vpop.f32.mrb[0].mxu0
          %v710 = vadd.f32 %v399, %v709
          %v711 = vpop.f32.mrb[0].mxu0
          %712 = vmatprep.mubr.bf16.mxu0 %v503
          %713 = vmatmul.mubr.bf16.gmra.mrb[0].mxu0 %v502
          %v714 = vpop.f32.mrb[0].mxu0
          %v715 = vadd.f32 %v399, %v714
          %v716 = vpop.f32.mrb[0].mxu0
          %v717 = vpop.f32.mrb[0].mxu0
          %v718 = vadd.f32 %v399, %v717
          %v719 = vpop.f32.mrb[0].mxu0
          %720 = vmatprep.mubr.bf16.mxu0 %v505
          %721 = vmatmul.mubr.bf16.gmra.mrb[0].mxu0 %v504
          %v722 = vpop.f32.mrb[0].mxu0
          %v723 = vadd.f32 %v399, %v722
          %v724 = vpop.f32.mrb[0].mxu0
          %v725 = vpop.f32.mrb[0].mxu0
          %v726 = vadd.f32 %v399, %v725
          %v727 = vpop.f32.mrb[0].mxu0
          %728 = vmatprep.mubr.bf16.mxu0 %v507
          %729 = vmatmul.mubr.bf16.gmra.mrb[0].mxu0 %v506
          %v730 = vpop.f32.mrb[0].mxu0
          %v731 = vadd.f32 %v399, %v730
          %v732 = vpop.f32.mrb[0].mxu0
          %v733 = vpop.f32.mrb[0].mxu0
          %v734 = vadd.f32 %v399, %v733
          %v735 = vpop.f32.mrb[0].mxu0
          %736 = vmatprep.mubr.bf16.mxu0 %v509
          %737 = vmatmul.mubr.bf16.gmra.mrb[0].mxu0 %v508
          %v738 = vpop.f32.mrb[0].mxu0
          %v739 = vadd.f32 %v399, %v738
          %v740 = vpop.f32.mrb[0].mxu0
          %v741 = vpop.f32.mrb[0].mxu0
          %v742 = vadd.f32 %v399, %v741
          %v743 = vpop.f32.mrb[0].mxu0
          %744 = vmatprep.mubr.bf16.mxu0 %v511
          %745 = vmatmul.mubr.bf16.gmra.mrb[0].mxu0 %v510
          %v746 = vpop.f32.mrb[0].mxu0
          %v747 = vadd.f32 %v399, %v746
          %v748 = vpop.f32.mrb[0].mxu0
          %v749 = vpop.f32.mrb[0].mxu0
          %v750 = vadd.f32 %v399, %v749
          %v751 = vpop.f32.mrb[0].mxu0
          %752 = vmatprep.mubr.bf16.mxu0 %v513
          %753 = vmatmul.mubr.bf16.gmra.mrb[0].mxu0 %v512
          %v754 = vpop.f32.mrb[0].mxu0
          %v755 = vadd.f32 %v399, %v754
          %v756 = vpop.f32.mrb[0].mxu0
          %v757 = vpop.f32.mrb[0].mxu0
          %v758 = vadd.f32 %v399, %v757
          %v759 = vpop.f32.mrb[0].mxu0
          %760 = vmatprep.mubr.bf16.mxu0 %v515
          %761 = vmatmul.mubr.bf16.gmra.mrb[0].mxu0 %v514
          %v762 = vpop.f32.mrb[0].mxu0
          %v763 = vadd.f32 %v399, %v762
          %v764 = vpop.f32.mrb[0].mxu0
          %v765 = vpop.f32.mrb[0].mxu0
          %v766 = vadd.f32 %v399, %v765
          %v767 = vpop.f32.mrb[0].mxu0
          %768 = vmatprep.mubr.bf16.mxu0 %v517
          %769 = vmatmul.mubr.bf16.gmra.mrb[0].mxu0 %v516
          %v770 = vpop.f32.mrb[0].mxu0
          %v771 = vadd.f32 %v399, %v770
          %v772 = vpop.f32.mrb[0].mxu0
          %v773 = vpop.f32.mrb[0].mxu0
          %v774 = vadd.f32 %v399, %v773
          %v775 = vpop.f32.mrb[0].mxu0
          %776 = vmatprep.mubr.bf16.mxu0 %v519
          %777 = vmatmul.mubr.bf16.gmra.mrb[0].mxu0 %v518
          %v778 = vpop.f32.mrb[0].mxu0
          %v779 = vadd.f32 %v399, %v778
          %v780 = vpop.f32.mrb[0].mxu0
          %v781 = vpop.f32.mrb[0].mxu0
          %v782 = vadd.f32 %v399, %v781
          %v783 = vpop.f32.mrb[0].mxu0
          %784 = vmatprep.mubr.bf16.mxu0 %v521
          %785 = vmatmul.mubr.bf16.gmra.mrb[0].mxu0 %v520
          %v786 = vpop.f32.mrb[0].mxu0
          %v787 = vadd.f32 %v399, %v786
          %v788 = vpop.f32.mrb[0].mxu0
          %v789 = vpop.f32.mrb[0].mxu0
          %v790 = vadd.f32 %v399, %v789
          %v791 = vpop.f32.mrb[0].mxu0
          %792 = vmatprep.mubr.bf16.mxu0 %v523
          %793 = vmatmul.mubr.bf16.gmra.mrb[0].mxu0 %v522
          %v794 = vpop.f32.mrb[0].mxu0
          %v795 = vadd.f32 %v399, %v794
          %v796 = vpop.f32.mrb[0].mxu0
          %v797 = vpop.f32.mrb[0].mxu0
          %v798 = vadd.f32 %v399, %v797
          %v799 = vpop.f32.mrb[0].mxu0
          %800 = vmatprep.mubr.bf16.mxu0 %v525
          %801 = vmatmul.mubr.bf16.gmra.mrb[0].mxu0 %v524
          %v802 = vpop.f32.mrb[0].mxu0
          %v803 = vadd.f32 %v399, %v802
          %v804 = vpop.f32.mrb[0].mxu0
          %v805 = vpop.f32.mrb[0].mxu0
          %v806 = vadd.f32 %v399, %v805
          %v807 = vpop.f32.mrb[0].mxu0
          %808 = vmatprep.mubr.bf16.mxu0 %v527
          %809 = vmatmul.mubr.bf16.gmra.mrb[0].mxu0 %v526
          %v810 = vpop.f32.mrb[0].mxu0
          %v811 = vadd.f32 %v399, %v810
          %v812 = vpop.f32.mrb[0].mxu0
          %v813 = vpop.f32.mrb[0].mxu0
          %v814 = vadd.f32 %v399, %v813
          %v815 = vpop.f32.mrb[0].mxu0
          %816 = vdwg.mxu0
          %v817 = vxor.u32 %v691, 2147483648
          %v818 = vxor.u32 %v694, 2147483648
          %v819 = vxor.u32 %v699, 2147483648
          %v820 = vxor.u32 %v702, 2147483648
          %v821 = vxor.u32 %v707, 2147483648
          %v822 = vxor.u32 %v710, 2147483648
          %v823 = vxor.u32 %v715, 2147483648
          %v824 = vxor.u32 %v718, 2147483648
          %v825 = vxor.u32 %v723, 2147483648
          %v826 = vxor.u32 %v726, 2147483648
          %v827 = vxor.u32 %v731, 2147483648
          %v828 = vxor.u32 %v734, 2147483648
          %v829 = vxor.u32 %v739, 2147483648
          %v830 = vxor.u32 %v742, 2147483648
          %v831 = vxor.u32 %v747, 2147483648
          %v832 = vxor.u32 %v750, 2147483648
          %v833 = vxor.u32 %v755, 2147483648
          %v834 = vxor.u32 %v758, 2147483648
          %v835 = vxor.u32 %v763, 2147483648
          %v836 = vxor.u32 %v766, 2147483648
          %v837 = vxor.u32 %v771, 2147483648
          %v838 = vxor.u32 %v774, 2147483648
          %v839 = vxor.u32 %v779, 2147483648
          %v840 = vxor.u32 %v782, 2147483648
          %v841 = vxor.u32 %v787, 2147483648
          %v842 = vxor.u32 %v790, 2147483648
          %v843 = vxor.u32 %v795, 2147483648
          %v844 = vxor.u32 %v798, 2147483648
          %v845 = vxor.u32 %v803, 2147483648
          %v846 = vxor.u32 %v806, 2147483648
          %v847 = vxor.u32 %v811, 2147483648
          %v848 = vxor.u32 %v814, 2147483648
          %v849 = vmul.f32 %v817, 1.442695
          %v850 = vpow.pop %v849
          %v851 = vmul.f32 %v818, 1.442695
          %v852 = vpow.pop %v851
          %v853 = vmul.f32 %v819, 1.442695
          %v854 = vpow.pop %v853
          %v855 = vmul.f32 %v820, 1.442695
          %v856 = vpow.pop %v855
          %v857 = vmul.f32 %v821, 1.442695
          %v858 = vpow.pop %v857
          %v859 = vmul.f32 %v822, 1.442695
          %v860 = vpow.pop %v859
          %v861 = vmul.f32 %v823, 1.442695
          %v862 = vpow.pop %v861
          %v863 = vmul.f32 %v824, 1.442695
          %v864 = vpow.pop %v863
          %v865 = vmul.f32 %v825, 1.442695
          %v866 = vpow.pop %v865
          %v867 = vmul.f32 %v826, 1.442695
          %v868 = vpow.pop %v867
          %v869 = vmul.f32 %v827, 1.442695
          %v870 = vpow.pop %v869
          %v871 = vmul.f32 %v828, 1.442695
          %v872 = vpow.pop %v871
          %v873 = vmul.f32 %v829, 1.442695
          %v874 = vpow.pop %v873
          %v875 = vmul.f32 %v830, 1.442695
          %v876 = vpow.pop %v875
          %v877 = vmul.f32 %v831, 1.442695
          %v878 = vpow.pop %v877
          %v879 = vmul.f32 %v832, 1.442695
          %v880 = vpow.pop %v879
          %v881 = vmul.f32 %v833, 1.442695
          %v882 = vpow.pop %v881
          %v883 = vmul.f32 %v834, 1.442695
          %v884 = vpow.pop %v883
          %v885 = vmul.f32 %v835, 1.442695
          %v886 = vpow.pop %v885
          %v887 = vmul.f32 %v836, 1.442695
          %v888 = vpow.pop %v887
          %v889 = vmul.f32 %v837, 1.442695
          %v890 = vpow.pop %v889
          %v891 = vmul.f32 %v838, 1.442695
          %v892 = vpow.pop %v891
          %v893 = vmul.f32 %v839, 1.442695
          %v894 = vpow.pop %v893
          %v895 = vmul.f32 %v840, 1.442695
          %v896 = vpow.pop %v895
          %v897 = vmul.f32 %v841, 1.442695
          %v898 = vpow.pop %v897
          %v899 = vmul.f32 %v842, 1.442695
          %v900 = vpow.pop %v899
          %v901 = vmul.f32 %v843, 1.442695
          %v902 = vpow.pop %v901
          %v903 = vmul.f32 %v844, 1.442695
          %v904 = vpow.pop %v903
          %v905 = vmul.f32 %v845, 1.442695
          %v906 = vpow.pop %v905
          %v907 = vmul.f32 %v846, 1.442695
          %v908 = vpow.pop %v907
          %v909 = vmul.f32 %v847, 1.442695
          %v910 = vpow.pop %v909
          %v911 = vmul.f32 %v848, 1.442695
          %v912 = vpow.pop %v911
          %v913 = vadd.f32 %v850, 1.0
          %v914 = vadd.f32 %v852, 1.0
          %v915 = vadd.f32 %v854, 1.0
          %v916 = vadd.f32 %v856, 1.0
          %v917 = vadd.f32 %v858, 1.0
          %v918 = vadd.f32 %v860, 1.0
          %v919 = vadd.f32 %v862, 1.0
          %v920 = vadd.f32 %v864, 1.0
          %v921 = vadd.f32 %v866, 1.0
          %v922 = vadd.f32 %v868, 1.0
          %v923 = vadd.f32 %v870, 1.0
          %v924 = vadd.f32 %v872, 1.0
          %v925 = vadd.f32 %v874, 1.0
          %v926 = vadd.f32 %v876, 1.0
          %v927 = vadd.f32 %v878, 1.0
          %v928 = vadd.f32 %v880, 1.0
          %v929 = vadd.f32 %v882, 1.0
          %v930 = vadd.f32 %v884, 1.0
          %v931 = vadd.f32 %v886, 1.0
          %v932 = vadd.f32 %v888, 1.0
          %v933 = vadd.f32 %v890, 1.0
          %v934 = vadd.f32 %v892, 1.0
          %v935 = vadd.f32 %v894, 1.0
          %v936 = vadd.f32 %v896, 1.0
          %v937 = vadd.f32 %v898, 1.0
          %v938 = vadd.f32 %v900, 1.0
          %v939 = vadd.f32 %v902, 1.0
          %v940 = vadd.f32 %v904, 1.0
          %v941 = vadd.f32 %v906, 1.0
          %v942 = vadd.f32 %v908, 1.0
          %v943 = vadd.f32 %v910, 1.0
          %v944 = vadd.f32 %v912, 1.0
          %v945 = vrcp.pop %v913
          %v946 = vmul.f32 1.0, %v945
          %v947 = vrcp.pop %v914
          %v948 = vmul.f32 1.0, %v947
          %v949 = vrcp.pop %v915
          %v950 = vmul.f32 1.0, %v949
          %v951 = vrcp.pop %v916
          %v952 = vmul.f32 1.0, %v951
          %v953 = vrcp.pop %v917
          %v954 = vmul.f32 1.0, %v953
          %v955 = vrcp.pop %v918
          %v956 = vmul.f32 1.0, %v955
          %v957 = vrcp.pop %v919
          %v958 = vmul.f32 1.0, %v957
          %v959 = vrcp.pop %v920
          %v960 = vmul.f32 1.0, %v959
          %v961 = vrcp.pop %v921
          %v962 = vmul.f32 1.0, %v961
          %v963 = vrcp.pop %v922
          %v964 = vmul.f32 1.0, %v963
          %v965 = vrcp.pop %v923
          %v966 = vmul.f32 1.0, %v965
          %v967 = vrcp.pop %v924
          %v968 = vmul.f32 1.0, %v967
          %v969 = vrcp.pop %v925
          %v970 = vmul.f32 1.0, %v969
          %v971 = vrcp.pop %v926
          %v972 = vmul.f32 1.0, %v971
          %v973 = vrcp.pop %v927
          %v974 = vmul.f32 1.0, %v973
          %v975 = vrcp.pop %v928
          %v976 = vmul.f32 1.0, %v975
          %v977 = vrcp.pop %v929
          %v978 = vmul.f32 1.0, %v977
          %v979 = vrcp.pop %v930
          %v980 = vmul.f32 1.0, %v979
          %v981 = vrcp.pop %v931
          %v982 = vmul.f32 1.0, %v981
          %v983 = vrcp.pop %v932
          %v984 = vmul.f32 1.0, %v983
          %v985 = vrcp.pop %v933
          %v986 = vmul.f32 1.0, %v985
          %v987 = vrcp.pop %v934
          %v988 = vmul.f32 1.0, %v987
          %v989 = vrcp.pop %v935
          %v990 = vmul.f32 1.0, %v989
          %v991 = vrcp.pop %v936
          %v992 = vmul.f32 1.0, %v991
          %v993 = vrcp.pop %v937
          %v994 = vmul.f32 1.0, %v993
          %v995 = vrcp.pop %v938
          %v996 = vmul.f32 1.0, %v995
          %v997 = vrcp.pop %v939
          %v998 = vmul.f32 1.0, %v997
          %v999 = vrcp.pop %v940
          %v1000 = vmul.f32 1.0, %v999
          %v1001 = vrcp.pop %v941
          %v1002 = vmul.f32 1.0, %v1001
          %v1003 = vrcp.pop %v942
          %v1004 = vmul.f32 1.0, %v1003
          %v1005 = vrcp.pop %v943
          %v1006 = vmul.f32 1.0, %v1005
          %v1007 = vrcp.pop %v944
          %v1008 = vmul.f32 1.0, %v1007
          %v1009 = vmul.f32 %v691, %v946
          %v1010 = vmul.f32 %v694, %v948
          %v1011 = vmul.f32 %v699, %v950
          %v1012 = vmul.f32 %v702, %v952
          %v1013 = vmul.f32 %v707, %v954
          %v1014 = vmul.f32 %v710, %v956
          %v1015 = vmul.f32 %v715, %v958
          %v1016 = vmul.f32 %v718, %v960
          %v1017 = vmul.f32 %v723, %v962
          %v1018 = vmul.f32 %v726, %v964
          %v1019 = vmul.f32 %v731, %v966
          %v1020 = vmul.f32 %v734, %v968
          %v1021 = vmul.f32 %v739, %v970
          %v1022 = vmul.f32 %v742, %v972
          %v1023 = vmul.f32 %v747, %v974
          %v1024 = vmul.f32 %v750, %v976
          %v1025 = vmul.f32 %v755, %v978
          %v1026 = vmul.f32 %v758, %v980
          %v1027 = vmul.f32 %v763, %v982
          %v1028 = vmul.f32 %v766, %v984
          %v1029 = vmul.f32 %v771, %v986
          %v1030 = vmul.f32 %v774, %v988
          %v1031 = vmul.f32 %v779, %v990
          %v1032 = vmul.f32 %v782, %v992
          %v1033 = vmul.f32 %v787, %v994
          %v1034 = vmul.f32 %v790, %v996
          %v1035 = vmul.f32 %v795, %v998
          %v1036 = vmul.f32 %v798, %v1000
          %v1037 = vmul.f32 %v803, %v1002
          %v1038 = vmul.f32 %v806, %v1004
          %v1039 = vmul.f32 %v811, %v1006
          %v1040 = vmul.f32 %v814, %v1008
          %1041 = vst [vmem:[#allocation2] sm:$0xff] %v1009
          %1042 = vst [vmem:[#allocation2 + $0x8] sm:$0xff] %v1010
          %1043 = vst [vmem:[#allocation2 + $0x10] sm:$0xff] %v1011
          %1044 = vst [vmem:[#allocation2 + $0x18] sm:$0xff] %v1012
          %1045 = vst [vmem:[#allocation2 + $0x20] sm:$0xff] %v1013
          %1046 = vst [vmem:[#allocation2 + $0x28] sm:$0xff] %v1014
          %1047 = vst [vmem:[#allocation2 + $0x30] sm:$0xff] %v1015
          %1048 = vst [vmem:[#allocation2 + $0x38] sm:$0xff] %v1016
          %1049 = vst [vmem:[#allocation2 + $0x40] sm:$0xff] %v1017
          %1050 = vst [vmem:[#allocation2 + $0x48] sm:$0xff] %v1018
          %1051 = vst [vmem:[#allocation2 + $0x50] sm:$0xff] %v1019
          %1052 = vst [vmem:[#allocation2 + $0x58] sm:$0xff] %v1020
          %1053 = vst [vmem:[#allocation2 + $0x60] sm:$0xff] %v1021
          %1054 = vst [vmem:[#allocation2 + $0x68] sm:$0xff] %v1022
          %1055 = vst [vmem:[#allocation2 + $0x70] sm:$0xff] %v1023
          %1056 = vst [vmem:[#allocation2 + $0x78] sm:$0xff] %v1024
          %1057 = vst [vmem:[#allocation2 + $0x80] sm:$0xff] %v1025
          %1058 = vst [vmem:[#allocation2 + $0x88] sm:$0xff] %v1026
          %1059 = vst [vmem:[#allocation2 + $0x90] sm:$0xff] %v1027
          %1060 = vst [vmem:[#allocation2 + $0x98] sm:$0xff] %v1028
          %1061 = vst [vmem:[#allocation2 + $0xa0] sm:$0xff] %v1029
          %1062 = vst [vmem:[#allocation2 + $0xa8] sm:$0xff] %v1030
          %1063 = vst [vmem:[#allocation2 + $0xb0] sm:$0xff] %v1031
          %1064 = vst [vmem:[#allocation2 + $0xb8] sm:$0xff] %v1032
          %1065 = vst [vmem:[#allocation2 + $0xc0] sm:$0xff] %v1033
          %1066 = vst [vmem:[#allocation2 + $0xc8] sm:$0xff] %v1034
          %1067 = vst [vmem:[#allocation2 + $0xd0] sm:$0xff] %v1035
          %1068 = vst [vmem:[#allocation2 + $0xd8] sm:$0xff] %v1036
          %1069 = vst [vmem:[#allocation2 + $0xe0] sm:$0xff] %v1037
          %1070 = vst [vmem:[#allocation2 + $0xe8] sm:$0xff] %v1038
          %1071 = vst [vmem:[#allocation2 + $0xf0] sm:$0xff] %v1039
          %1072 = vst [vmem:[#allocation2 + $0xf8] sm:$0xff] %v1040
        $region56: #{tpu_custom_call.1} parent=39 // pred_fallthru
          _
        %v1073 = vld [vmem:[#allocation2] sm:$0xff]
        %v1074 = vld [vmem:[#allocation2 + $0x8] sm:$0xff]
        %v1075 = vld [vmem:[#allocation2 + $0x10] sm:$0xff]
        %v1076 = vld [vmem:[#allocation2 + $0x18] sm:$0xff]
        %v1077 = vld [vmem:[#allocation2 + $0x20] sm:$0xff]
        %v1078 = vld [vmem:[#allocation2 + $0x28] sm:$0xff]
        %v1079 = vld [vmem:[#allocation2 + $0x30] sm:$0xff]
        %v1080 = vld [vmem:[#allocation2 + $0x38] sm:$0xff]
        %v1081 = vld [vmem:[#allocation2 + $0x40] sm:$0xff]
        %v1082 = vld [vmem:[#allocation2 + $0x48] sm:$0xff]
        %v1083 = vld [vmem:[#allocation2 + $0x50] sm:$0xff]
        %v1084 = vld [vmem:[#allocation2 + $0x58] sm:$0xff]
        %v1085 = vld [vmem:[#allocation2 + $0x60] sm:$0xff]
        %v1086 = vld [vmem:[#allocation2 + $0x68] sm:$0xff]
        %v1087 = vld [vmem:[#allocation2 + $0x70] sm:$0xff]
        %v1088 = vld [vmem:[#allocation2 + $0x78] sm:$0xff]
        %v1089 = vld [vmem:[#allocation2 + $0x80] sm:$0xff]
        %v1090 = vld [vmem:[#allocation2 + $0x88] sm:$0xff]
        %v1091 = vld [vmem:[#allocation2 + $0x90] sm:$0xff]
        %v1092 = vld [vmem:[#allocation2 + $0x98] sm:$0xff]
        %v1093 = vld [vmem:[#allocation2 + $0xa0] sm:$0xff]
        %v1094 = vld [vmem:[#allocation2 + $0xa8] sm:$0xff]
        %v1095 = vld [vmem:[#allocation2 + $0xb0] sm:$0xff]
        %v1096 = vld [vmem:[#allocation2 + $0xb8] sm:$0xff]
        %v1097 = vld [vmem:[#allocation2 + $0xc0] sm:$0xff]
        %v1098 = vld [vmem:[#allocation2 + $0xc8] sm:$0xff]
        %v1099 = vld [vmem:[#allocation2 + $0xd0] sm:$0xff]
        %v1100 = vld [vmem:[#allocation2 + $0xd8] sm:$0xff]
        %v1101 = vld [vmem:[#allocation2 + $0xe0] sm:$0xff]
        %v1102 = vld [vmem:[#allocation2 + $0xe8] sm:$0xff]
        %v1103 = vld [vmem:[#allocation2 + $0xf0] sm:$0xff]
        %v1104 = vld [vmem:[#allocation2 + $0xf8] sm:$0xff]
        %v1105 = vpack.c.bf16 %v1074, %v1073
        %v1106 = vpack.c.bf16 %v1076, %v1075
        %v1107 = vpack.c.bf16 %v1078, %v1077
        %v1108 = vpack.c.bf16 %v1080, %v1079
        %v1109 = vpack.c.bf16 %v1082, %v1081
        %v1110 = vpack.c.bf16 %v1084, %v1083
        %v1111 = vpack.c.bf16 %v1086, %v1085
        %v1112 = vpack.c.bf16 %v1088, %v1087
        %v1113 = vpack.c.bf16 %v1090, %v1089
        %v1114 = vpack.c.bf16 %v1092, %v1091
        %v1115 = vpack.c.bf16 %v1094, %v1093
        %v1116 = vpack.c.bf16 %v1096, %v1095
        %v1117 = vpack.c.bf16 %v1098, %v1097
        %v1118 = vpack.c.bf16 %v1100, %v1099
        %v1119 = vpack.c.bf16 %v1102, %v1101
        %v1120 = vpack.c.bf16 %v1104, %v1103
        %v1121 = vld [vmem:[%s285] sm:$0xf]
        %v1122 = vld [vmem:[%s285 + $0x4] sm:$0xf]
        %v1123 = vld [vmem:[%s285 + $0x8] sm:$0xf]
        %v1124 = vld [vmem:[%s285 + $0xc] sm:$0xf]
        %v1125 = vld [vmem:[%s285 + $0x10] sm:$0xf]
        %v1126 = vld [vmem:[%s285 + $0x14] sm:$0xf]
        %v1127 = vld [vmem:[%s285 + $0x18] sm:$0xf]
        %v1128 = vld [vmem:[%s285 + $0x1c] sm:$0xf]
        %v1129 = vld [vmem:[%s285 + $0x20] sm:$0xf]
        %v1130 = vld [vmem:[%s285 + $0x24] sm:$0xf]
        %v1131 = vld [vmem:[%s285 + $0x28] sm:$0xf]
        %v1132 = vld [vmem:[%s285 + $0x2c] sm:$0xf]
        %v1133 = vld [vmem:[%s285 + $0x30] sm:$0xf]
        %v1134 = vld [vmem:[%s285 + $0x34] sm:$0xf]
        %v1135 = vld [vmem:[%s285 + $0x38] sm:$0xf]
        %v1136 = vld [vmem:[%s285 + $0x3c] sm:$0xf]
        %v1137 = vld [vmem:[%s323] sm:$0x1]
        %v1138 = vunpack.c.l.bf16 %v1137
        %v1139 = vlaneseq
        %v1140 = vshrl.u32 %v1139, 7
        %v1141 = vsub.s32 0, %v1140
        %v1142 = vrot.slane %v1138, %v1141
        %v1159 = vunpack.c.l.b16 %v1121
        %v1160 = vunpack.c.l.b16 %v1122
        %v1161 = vunpack.c.l.b16 %v1123
        %v1162 = vunpack.c.l.b16 %v1124
        %v1163 = vunpack.c.l.b16 %v1125
        %v1164 = vunpack.c.l.b16 %v1126
        %v1165 = vunpack.c.l.b16 %v1127
        %v1166 = vunpack.c.l.b16 %v1128
        %v1167 = vunpack.c.l.b16 %v1129
        %v1168 = vunpack.c.l.b16 %v1130
        %v1169 = vunpack.c.l.b16 %v1131
        %v1170 = vunpack.c.l.b16 %v1132
        %v1171 = vunpack.c.l.b16 %v1133
        %v1172 = vunpack.c.l.b16 %v1134
        %v1173 = vunpack.c.l.b16 %v1135
        %v1174 = vunpack.c.l.b16 %v1136
        %v1175 = vpack.c.b16 %v1160, %v1159
        %v1176 = vpack.c.b16 %v1162, %v1161
        %v1177 = vpack.c.b16 %v1164, %v1163
        %v1178 = vpack.c.b16 %v1166, %v1165
        %v1179 = vpack.c.b16 %v1168, %v1167
        %v1180 = vpack.c.b16 %v1170, %v1169
        %v1181 = vpack.c.b16 %v1172, %v1171
        %v1182 = vpack.c.b16 %v1174, %v1173
        %1191 = vmatprep.subr.bf16.mxu0 0
        %1192 = vmatpush1.bf16.msra.mxu0 %v1175
        %1193 = vmatprep.subr.bf16.mxu0 0
        %1194 = vmatpush1.bf16.msra.mxu0 %v1176
        %1195 = vmatprep.subr.bf16.mxu0 0
        %1196 = vmatpush1.bf16.msra.mxu0 %v1177
        %1197 = vmatprep.subr.bf16.mxu0 0
        %1198 = vmatpush1.bf16.msra.mxu0 %v1178
        %1199 = vmatprep.subr.bf16.mxu0 0
        %1200 = vmatpush1.bf16.msra.mxu0 %v1179
        %1201 = vmatprep.subr.bf16.mxu0 0
        %1202 = vmatpush1.bf16.msra.mxu0 %v1180
        %1203 = vmatprep.subr.bf16.mxu0 0
        %1204 = vmatpush1.bf16.msra.mxu0 %v1181
        %1205 = vmatprep.subr.bf16.mxu0 0
        %1206 = vmatpush1.bf16.msra.mxu0 %v1182
        %1207 = vmatprep.subr.bf16.mxu0 0
        %1208 = vmatpush1.bf16.msra.mxu0 0
        %1209 = vmatprep.subr.bf16.mxu0 0
        %1210 = vmatpush1.bf16.msra.mxu0 0
        %1211 = vmatprep.subr.bf16.mxu0 0
        %1212 = vmatpush1.bf16.msra.mxu0 0
        %1213 = vmatprep.subr.bf16.mxu0 0
        %1214 = vmatpush1.bf16.msra.mxu0 0
        %1215 = vmatprep.subr.bf16.mxu0 0
        %1216 = vmatpush1.bf16.msra.mxu0 0
        %1217 = vmatprep.subr.bf16.mxu0 0
        %1218 = vmatpush1.bf16.msra.mxu0 0
        %1219 = vmatprep.subr.bf16.mxu0 0
        %1220 = vmatpush1.bf16.msra.mxu0 0
        %1221 = vmatprep.subr.bf16.mxu0 0
        %1222 = vmatpush1.bf16.msra.mxu0 0
        %1223 = vmatprep.mubr.bf16.mxu0 0
        %1224 = vmatmul.mubr.bf16.gmra.mrb[0].mxu0 %v1105
        %v1225 = vpop.f32.mrb[0].mxu0
        %v1226 = vadd.f32 %v1142, %v1225
        %v1227 = vpop.f32.mrb[0].mxu0
        %v1228 = vpop.f32.mrb[0].mxu0
        %v1229 = vadd.f32 %v1142, %v1228
        %v1230 = vpop.f32.mrb[0].mxu0
        %1231 = vmatprep.mubr.bf16.mxu0 0
        %1232 = vmatmul.mubr.bf16.gmra.mrb[0].mxu0 %v1106
        %v1233 = vpop.f32.mrb[0].mxu0
        %v1234 = vadd.f32 %v1142, %v1233
        %v1235 = vpop.f32.mrb[0].mxu0
        %v1236 = vpop.f32.mrb[0].mxu0
        %v1237 = vadd.f32 %v1142, %v1236
        %v1238 = vpop.f32.mrb[0].mxu0
        %1239 = vmatprep.mubr.bf16.mxu0 0
        %1240 = vmatmul.mubr.bf16.gmra.mrb[0].mxu0 %v1107
        %v1241 = vpop.f32.mrb[0].mxu0
        %v1242 = vadd.f32 %v1142, %v1241
        %v1243 = vpop.f32.mrb[0].mxu0
        %v1244 = vpop.f32.mrb[0].mxu0
        %v1245 = vadd.f32 %v1142, %v1244
        %v1246 = vpop.f32.mrb[0].mxu0
        %1247 = vmatprep.mubr.bf16.mxu0 0
        %1248 = vmatmul.mubr.bf16.gmra.mrb[0].mxu0 %v1108
        %v1249 = vpop.f32.mrb[0].mxu0
        %v1250 = vadd.f32 %v1142, %v1249
        %v1251 = vpop.f32.mrb[0].mxu0
        %v1252 = vpop.f32.mrb[0].mxu0
        %v1253 = vadd.f32 %v1142, %v1252
        %v1254 = vpop.f32.mrb[0].mxu0
        %1255 = vmatprep.mubr.bf16.mxu0 0
        %1256 = vmatmul.mubr.bf16.gmra.mrb[0].mxu0 %v1109
        %v1257 = vpop.f32.mrb[0].mxu0
        %v1258 = vadd.f32 %v1142, %v1257
        %v1259 = vpop.f32.mrb[0].mxu0
        %v1260 = vpop.f32.mrb[0].mxu0
        %v1261 = vadd.f32 %v1142, %v1260
        %v1262 = vpop.f32.mrb[0].mxu0
        %1263 = vmatprep.mubr.bf16.mxu0 0
        %1264 = vmatmul.mubr.bf16.gmra.mrb[0].mxu0 %v1110
        %v1265 = vpop.f32.mrb[0].mxu0
        %v1266 = vadd.f32 %v1142, %v1265
        %v1267 = vpop.f32.mrb[0].mxu0
        %v1268 = vpop.f32.mrb[0].mxu0
        %v1269 = vadd.f32 %v1142, %v1268
        %v1270 = vpop.f32.mrb[0].mxu0
        %1271 = vmatprep.mubr.bf16.mxu0 0
        %1272 = vmatmul.mubr.bf16.gmra.mrb[0].mxu0 %v1111
        %v1273 = vpop.f32.mrb[0].mxu0
        %v1274 = vadd.f32 %v1142, %v1273
        %v1275 = vpop.f32.mrb[0].mxu0
        %v1276 = vpop.f32.mrb[0].mxu0
        %v1277 = vadd.f32 %v1142, %v1276
        %v1278 = vpop.f32.mrb[0].mxu0
        %1279 = vmatprep.mubr.bf16.mxu0 0
        %1280 = vmatmul.mubr.bf16.gmra.mrb[0].mxu0 %v1112
        %v1281 = vpop.f32.mrb[0].mxu0
        %v1282 = vadd.f32 %v1142, %v1281
        %v1283 = vpop.f32.mrb[0].mxu0
        %v1284 = vpop.f32.mrb[0].mxu0
        %v1285 = vadd.f32 %v1142, %v1284
        %v1286 = vpop.f32.mrb[0].mxu0
        %1287 = vmatprep.mubr.bf16.mxu0 0
        %1288 = vmatmul.mubr.bf16.gmra.mrb[0].mxu0 %v1113
        %v1289 = vpop.f32.mrb[0].mxu0
        %v1290 = vadd.f32 %v1142, %v1289
        %v1291 = vpop.f32.mrb[0].mxu0
        %v1292 = vpop.f32.mrb[0].mxu0
        %v1293 = vadd.f32 %v1142, %v1292
        %v1294 = vpop.f32.mrb[0].mxu0
        %1295 = vmatprep.mubr.bf16.mxu0 0
        %1296 = vmatmul.mubr.bf16.gmra.mrb[0].mxu0 %v1114
        %v1297 = vpop.f32.mrb[0].mxu0
        %v1298 = vadd.f32 %v1142, %v1297
        %v1299 = vpop.f32.mrb[0].mxu0
        %v1300 = vpop.f32.mrb[0].mxu0
        %v1301 = vadd.f32 %v1142, %v1300
        %v1302 = vpop.f32.mrb[0].mxu0
        %1303 = vmatprep.mubr.bf16.mxu0 0
        %1304 = vmatmul.mubr.bf16.gmra.mrb[0].mxu0 %v1115
        %v1305 = vpop.f32.mrb[0].mxu0
        %v1306 = vadd.f32 %v1142, %v1305
        %v1307 = vpop.f32.mrb[0].mxu0
        %v1308 = vpop.f32.mrb[0].mxu0
        %v1309 = vadd.f32 %v1142, %v1308
        %v1310 = vpop.f32.mrb[0].mxu0
        %1311 = vmatprep.mubr.bf16.mxu0 0
        %1312 = vmatmul.mubr.bf16.gmra.mrb[0].mxu0 %v1116
        %v1313 = vpop.f32.mrb[0].mxu0
        %v1314 = vadd.f32 %v1142, %v1313
        %v1315 = vpop.f32.mrb[0].mxu0
        %v1316 = vpop.f32.mrb[0].mxu0
        %v1317 = vadd.f32 %v1142, %v1316
        %v1318 = vpop.f32.mrb[0].mxu0
        %1319 = vmatprep.mubr.bf16.mxu0 0
        %1320 = vmatmul.mubr.bf16.gmra.mrb[0].mxu0 %v1117
        %v1321 = vpop.f32.mrb[0].mxu0
        %v1322 = vadd.f32 %v1142, %v1321
        %v1323 = vpop.f32.mrb[0].mxu0
        %v1324 = vpop.f32.mrb[0].mxu0
        %v1325 = vadd.f32 %v1142, %v1324
        %v1326 = vpop.f32.mrb[0].mxu0
        %1327 = vmatprep.mubr.bf16.mxu0 0
        %1328 = vmatmul.mubr.bf16.gmra.mrb[0].mxu0 %v1118
        %v1329 = vpop.f32.mrb[0].mxu0
        %v1330 = vadd.f32 %v1142, %v1329
        %v1331 = vpop.f32.mrb[0].mxu0
        %v1332 = vpop.f32.mrb[0].mxu0
        %v1333 = vadd.f32 %v1142, %v1332
        %v1334 = vpop.f32.mrb[0].mxu0
        %1335 = vmatprep.mubr.bf16.mxu0 0
        %1336 = vmatmul.mubr.bf16.gmra.mrb[0].mxu0 %v1119
        %v1337 = vpop.f32.mrb[0].mxu0
        %v1338 = vadd.f32 %v1142, %v1337
        %v1339 = vpop.f32.mrb[0].mxu0
        %v1340 = vpop.f32.mrb[0].mxu0
        %v1341 = vadd.f32 %v1142, %v1340
        %v1342 = vpop.f32.mrb[0].mxu0
        %1343 = vmatprep.mubr.bf16.mxu0 0
        %1344 = vmatmul.mubr.bf16.gmra.mrb[0].mxu0 %v1120
        %v1345 = vpop.f32.mrb[0].mxu0
        %v1346 = vadd.f32 %v1142, %v1345
        %v1347 = vpop.f32.mrb[0].mxu0
        %v1348 = vpop.f32.mrb[0].mxu0
        %v1349 = vadd.f32 %v1142, %v1348
        %v1350 = vpop.f32.mrb[0].mxu0
        %1351 = vdwg.mxu0
        %v1352 = vpack.c.bf16 %v1229, %v1226
        %v1353 = vpack.c.bf16 %v1237, %v1234
        %v1354 = vpack.c.bf16 %v1245, %v1242
        %v1355 = vpack.c.bf16 %v1253, %v1250
        %v1356 = vpack.c.bf16 %v1261, %v1258
        %v1357 = vpack.c.bf16 %v1269, %v1266
        %v1358 = vpack.c.bf16 %v1277, %v1274
        %v1359 = vpack.c.bf16 %v1285, %v1282
        %v1360 = vpack.c.bf16 %v1293, %v1290
        %v1361 = vpack.c.bf16 %v1301, %v1298
        %v1362 = vpack.c.bf16 %v1309, %v1306
        %v1363 = vpack.c.bf16 %v1317, %v1314
        %v1364 = vpack.c.bf16 %v1325, %v1322
        %v1365 = vpack.c.bf16 %v1333, %v1330
        %v1366 = vpack.c.bf16 %v1341, %v1338
        %v1367 = vpack.c.bf16 %v1349, %v1346
        %v1384 = vunpack.c.l.b16 %v1352
        %v1385 = vunpack.c.h.b16 %v1352
        %v1386 = vunpack.c.l.b16 %v1353
        %v1387 = vunpack.c.h.b16 %v1353
        %v1388 = vunpack.c.l.b16 %v1354
        %v1389 = vunpack.c.h.b16 %v1354
        %v1390 = vunpack.c.l.b16 %v1355
        %v1391 = vunpack.c.h.b16 %v1355
        %v1392 = vunpack.c.l.b16 %v1356
        %v1393 = vunpack.c.h.b16 %v1356
        %v1394 = vunpack.c.l.b16 %v1357
        %v1395 = vunpack.c.h.b16 %v1357
        %v1396 = vunpack.c.l.b16 %v1358
        %v1397 = vunpack.c.h.b16 %v1358
        %v1398 = vunpack.c.l.b16 %v1359
        %v1399 = vunpack.c.h.b16 %v1359
        %v1400 = vunpack.c.l.b16 %v1360
        %v1401 = vunpack.c.h.b16 %v1360
        %v1402 = vunpack.c.l.b16 %v1361
        %v1403 = vunpack.c.h.b16 %v1361
        %v1404 = vunpack.c.l.b16 %v1362
        %v1405 = vunpack.c.h.b16 %v1362
        %v1406 = vunpack.c.l.b16 %v1363
        %v1407 = vunpack.c.h.b16 %v1363
        %v1408 = vunpack.c.l.b16 %v1364
        %v1409 = vunpack.c.h.b16 %v1364
        %v1410 = vunpack.c.l.b16 %v1365
        %v1411 = vunpack.c.h.b16 %v1365
        %v1412 = vunpack.c.l.b16 %v1366
        %v1413 = vunpack.c.h.b16 %v1366
        %v1414 = vunpack.c.l.b16 %v1367
        %v1415 = vunpack.c.h.b16 %v1367
        %v1416 = vpack.c.b16 %v1384, %v1384
        %v1417 = vpack.c.b16 %v1385, %v1385
        %v1418 = vpack.c.b16 %v1386, %v1386
        %v1419 = vpack.c.b16 %v1387, %v1387
        %v1420 = vpack.c.b16 %v1388, %v1388
        %v1421 = vpack.c.b16 %v1389, %v1389
        %v1422 = vpack.c.b16 %v1390, %v1390
        %v1423 = vpack.c.b16 %v1391, %v1391
        %v1424 = vpack.c.b16 %v1392, %v1392
        %v1425 = vpack.c.b16 %v1393, %v1393
        %v1426 = vpack.c.b16 %v1394, %v1394
        %v1427 = vpack.c.b16 %v1395, %v1395
        %v1428 = vpack.c.b16 %v1396, %v1396
        %v1429 = vpack.c.b16 %v1397, %v1397
        %v1430 = vpack.c.b16 %v1398, %v1398
        %v1431 = vpack.c.b16 %v1399, %v1399
        %v1432 = vpack.c.b16 %v1400, %v1400
        %v1433 = vpack.c.b16 %v1401, %v1401
        %v1434 = vpack.c.b16 %v1402, %v1402
        %v1435 = vpack.c.b16 %v1403, %v1403
        %v1436 = vpack.c.b16 %v1404, %v1404
        %v1437 = vpack.c.b16 %v1405, %v1405
        %v1438 = vpack.c.b16 %v1406, %v1406
        %v1439 = vpack.c.b16 %v1407, %v1407
        %v1440 = vpack.c.b16 %v1408, %v1408
        %v1441 = vpack.c.b16 %v1409, %v1409
        %v1442 = vpack.c.b16 %v1410, %v1410
        %v1443 = vpack.c.b16 %v1411, %v1411
        %v1444 = vpack.c.b16 %v1412, %v1412
        %v1445 = vpack.c.b16 %v1413, %v1413
        %v1446 = vpack.c.b16 %v1414, %v1414
        %v1447 = vpack.c.b16 %v1415, %v1415
        %1480 = vst [vmem:[%s319] sm:$0xf] %v1416
        %1481 = vst [vmem:[%s319 + $0x4] sm:$0xf] %v1417
        %1482 = vst [vmem:[%s319 + $0x8] sm:$0xf] %v1418
        %1483 = vst [vmem:[%s319 + $0xc] sm:$0xf] %v1419
        %1484 = vst [vmem:[%s319 + $0x10] sm:$0xf] %v1420
        %1485 = vst [vmem:[%s319 + $0x14] sm:$0xf] %v1421
        %1486 = vst [vmem:[%s319 + $0x18] sm:$0xf] %v1422
        %1487 = vst [vmem:[%s319 + $0x1c] sm:$0xf] %v1423
        %1488 = vst [vmem:[%s319 + $0x20] sm:$0xf] %v1424
        %1489 = vst [vmem:[%s319 + $0x24] sm:$0xf] %v1425
        %1490 = vst [vmem:[%s319 + $0x28] sm:$0xf] %v1426
        %1491 = vst [vmem:[%s319 + $0x2c] sm:$0xf] %v1427
        %1492 = vst [vmem:[%s319 + $0x30] sm:$0xf] %v1428
        %1493 = vst [vmem:[%s319 + $0x34] sm:$0xf] %v1429
        %1494 = vst [vmem:[%s319 + $0x38] sm:$0xf] %v1430
        %1495 = vst [vmem:[%s319 + $0x3c] sm:$0xf] %v1431
        %1496 = vst [vmem:[%s319 + $0x40] sm:$0xf] %v1432
        %1497 = vst [vmem:[%s319 + $0x44] sm:$0xf] %v1433
        %1498 = vst [vmem:[%s319 + $0x48] sm:$0xf] %v1434
        %1499 = vst [vmem:[%s319 + $0x4c] sm:$0xf] %v1435
        %1500 = vst [vmem:[%s319 + $0x50] sm:$0xf] %v1436
        %1501 = vst [vmem:[%s319 + $0x54] sm:$0xf] %v1437
        %1502 = vst [vmem:[%s319 + $0x58] sm:$0xf] %v1438
        %1503 = vst [vmem:[%s319 + $0x5c] sm:$0xf] %v1439
        %1504 = vst [vmem:[%s319 + $0x60] sm:$0xf] %v1440
        %1505 = vst [vmem:[%s319 + $0x64] sm:$0xf] %v1441
        %1506 = vst [vmem:[%s319 + $0x68] sm:$0xf] %v1442
        %1507 = vst [vmem:[%s319 + $0x6c] sm:$0xf] %v1443
        %1508 = vst [vmem:[%s319 + $0x70] sm:$0xf] %v1444
        %1509 = vst [vmem:[%s319 + $0x74] sm:$0xf] %v1445
        %1510 = vst [vmem:[%s319 + $0x78] sm:$0xf] %v1446
        %1511 = vst [vmem:[%s319 + $0x7c] sm:$0xf] %v1447
        %s1512 = sand.u32 %s165, 1
        %s1513 = scalar_lea.sflag [#allocation5], %s1512
        %s1514 = sand.u32 %s165, 1
        %s1515 = smul.addr %s1514, 128
        %s1516 = scalar_lea.vmem [#allocation9], %s1515
        // Predicated region
        $region57: #{tpu_custom_call.1} parent=39 // pred_check
          %p1517 = pneg %p175
        $region58: #{tpu_custom_call.1} parent=39 // pred_check_branch
          %1519 = sbr.rel (%p1517) target = $region60
        $region59: #{tpu_custom_call.1} parent=39 // pred_region
          %s1520 = smul.u32 32, %s27
          %s1522 = ssub.s32 2048, 2048
          %1523 = vsyncadd %s1513, %s1522
          %s1524 = smul.addr %s1520, 3
          %s1525 = sadd.s32 %s28, %s1524
          %s1526 = smul.addr %s1525, 64
          %s1527 = scalar_lea.hbm %s5, %s1526
          %s1528 = sshll.u32 %s1516, 4
          %s1529 = int_to_ptr.vmem [resolvable:$true] %s1528
          %1534 = dma.vmem_to_hbm [thread:$0]  %s1529, 2048, %s1527, %s1513, 64, 192, 4
        $region60: #{tpu_custom_call.1} parent=39 // pred_fallthru
          _
      $region40: #{tpu_custom_call.1} parent=5 // pred_fallthru
        _
      %p1535 = scmp.le.s32.totalorder 2, %s18
      // Predicated region
      $region61: #{tpu_custom_call.1} parent=5 // pred_check
        %p1536 = pneg %p1535
      $region62: #{tpu_custom_call.1} parent=5 // pred_check_branch
        %1538 = sbr.rel (%p1536) target = $region64
      $region63: #{tpu_custom_call.1} parent=5 // pred_region
        %s1539 = ssub.s32 %s18, 2
        // Predicated region
        $region65: #{tpu_custom_call.1} parent=63 // pred_check
          %p1540 = pneg %p181
        $region66: #{tpu_custom_call.1} parent=63 // pred_check_branch
          %1542 = sbr.rel (%p1540) target = $region68
        $region67: #{tpu_custom_call.1} parent=63 // pred_region
          %s1543 = sand.u32 %s166, 1
          %s1544 = scalar_lea.sflag [#allocation5], %s1543
          %s1545 = sand.u32 %s166, 1
          %s1546 = smul.addr %s1545, 128
          %s1547 = scalar_lea.vmem [#allocation9], %s1546
          %1548 = dma.done %s1544, 2048
        $region68: #{tpu_custom_call.1} parent=63 // pred_fallthru
          _
      $region64: #{tpu_custom_call.1} parent=5 // pred_fallthru
        _
    $region6: #{tpu_custom_call.1} parent=1 // loop_footer
      %s22 = sadd.s32 1, %s18
    $region7: #{tpu_custom_call.1} parent=1 // loop_footer_branch
      %17 = sbr.rel target = $region3
    $region8: #{tpu_custom_call.1} parent=1 // loop_exit
      _
    %1549 = vsyncpa [#allocation4], 1
    %s1550 = scalar_lea.sflag [#allocation4], 1
    %1551 = vsyncpa %s1550, 1
    %1552 = vsyncpa [#allocation7], 1
    %1553 = vsyncpa [#allocation5], 1
    %s1554 = scalar_lea.sflag [#allocation5], 1
    %1555 = vsyncpa %s1554, 1

</llo_original>
